<compile_context>
chip_gen: v7x
topology: tpu7x:2x2x1
jax: 0.10.0
libtpu: 0.0.40
codegen_flags: <defaults>
</compile_context>

<pallas_src>
import functools

import jax
import jax.numpy as jnp
from jax.experimental import pallas as pl
from jax.experimental.pallas import tpu as pltpu

HIDDEN = 8
IN_FEAT = 11


def model5_kernel(
    T, B,
    x_ref,        # (T*B, 12)  = [x | 1]
    wpre_ref,     # (12, 96)   layer-1 input projection + all biases (fused layout)
    wrec_ref,     # (24, 96)   block recurrent/cross-layer matrix (fused layout)
    wfc_ref,      # (24, 1)    fc1∘fc2 folded, zero rows for h1/h2 lanes
    bfc_ref,      # (1, 1)
    out_ref,      # (B, 1)
):
    H = HIDDEN
    n = T + 1                                # T steps + the extra x[4] step
    steps = list(range(T)) + [4]

    # One batched MXU matmul outside the serial chain: layer-1 input
    # projection + every bias, already in the fused 96-column gate layout
    # (sigmoid columns pre-scaled by 0.5 in the wrapper).
    g_pre = jnp.dot(x_ref[...], wpre_ref[...],
                    preferred_element_type=jnp.float32)          # (T*B, 12H)

    w_rec = wrec_ref[...]                                        # (3H, 12H)
    h_all = jnp.zeros((B, 3 * H), jnp.float32)                   # [h1 | h2 | h3]
    c_all = jnp.zeros((B, 3 * H), jnp.float32)                   # [c1 | c2 | c3]

    # Hoisted lane index for the head-of-wavefront masks.
    lane = jax.lax.broadcasted_iota(jnp.int32, (B, 3 * H), 1)

    # Wavefront: stage w runs layer1 step w, layer2 step w-1, layer3 step w-2.
    # All three cells share one matmul, one tanh over the gates and one fused
    # elementwise block per stage.  Fully unrolled (n + 2 stages).
    for w in range(n + 2):
        t = steps[min(w, n - 1)]             # tail stages reuse any row block;
        pre = g_pre[t * B:(t + 1) * B, :]    # their layer-1 output is ignored
        gates = pre + jnp.dot(h_all, w_rec,
                              preferred_element_type=jnp.float32)  # (B, 12H)
        th = jnp.tanh(gates)                 # ONE EUP call for all 12 gates
        sig = 0.5 * th[:, :9 * H] + 0.5      # sigmoid(z) = 0.5*tanh(z/2)+0.5
        i_all = sig[:, 0:3 * H]
        f_all = sig[:, 3 * H:6 * H]
        o_all = sig[:, 6 * H:9 * H]
        g_all = th[:, 9 * H:12 * H]
        c_new = f_all * c_all + i_all * g_all
        h_new = o_all * jnp.tanh(c_new)

        if w < 2:
            # Head of the wavefront: layer2 (w==0) / layer3 (w<=1) not live
            # yet — keep their lanes at the zero initial state.
            mask = lane < (w + 1) * H
            h_all = jnp.where(mask, h_new, h_all)
            c_all = jnp.where(mask, c_new, c_all)
        else:
            # Tail stages over-write h1/h2 lanes with dead values; they are
            # never read again (wfc has zero rows there), so no mask needed.
            h_all, c_all = h_new, c_new

    # Fused fc1∘fc2 head — h3 lanes selected by the zero-padded weight.
    out = jnp.dot(h_all, wfc_ref[...],
                  preferred_element_type=jnp.float32) + bfc_ref[...]
    out_ref[...] = out.astype(out_ref.dtype)


def _gate_blocks(w):
    """(4H, K) PyTorch weight -> per-gate (K, H) blocks (gate order i,f,g,o)."""
    H = HIDDEN
    wt = w.T
    return {"i": wt[:, 0:H], "f": wt[:, H:2 * H],
            "g": wt[:, 2 * H:3 * H], "o": wt[:, 3 * H:4 * H]}


def _bias_blocks(b):
    """(4H,) -> per-gate (1, H) blocks."""
    H = HIDDEN
    return {"i": b[0:H][None, :], "f": b[H:2 * H][None, :],
            "g": b[2 * H:3 * H][None, :], "o": b[3 * H:4 * H][None, :]}


def _build_fused_weights(params):
    """Pack the 3 LSTM cells + biases + FC head into the fused kernel layout."""
    H = HIDDEN
    z8 = jnp.zeros((H, H), jnp.float32)
    zin = jnp.zeros((IN_FEAT, H), jnp.float32)

    wih1, whh1 = _gate_blocks(params["wih1"]), _gate_blocks(params["whh1"])
    wih2, whh2 = _gate_blocks(params["wih2"]), _gate_blocks(params["whh2"])
    wih3, whh3 = _gate_blocks(params["wih3"]), _gate_blocks(params["whh3"])
    b1, b2, b3 = (_bias_blocks(params["b1"]), _bias_blocks(params["b2"]),
                  _bias_blocks(params["b3"]))

    order = ("i", "f", "o", "g")   # sigmoid gates first (9H cols), tanh gate last

    # W_rec: rows = [h1 | h2 | h3]  (3H, 12H)
    rec_cols = []
    for g in order:
        rec_cols.append(jnp.concatenate([whh1[g], z8, z8], axis=0))        # layer1
        rec_cols.append(jnp.concatenate([wih2[g], whh2[g], z8], axis=0))   # layer2
        rec_cols.append(jnp.concatenate([z8, wih3[g], whh3[g]], axis=0))   # layer3
    w_rec = jnp.concatenate(rec_cols, axis=1)                              # (24, 96)

    # W_pre: rows = [x (11) | ones (1)]  (12, 12H) — carries Wih1 and ALL biases.
    pre_cols = []
    for g in order:
        pre_cols.append(jnp.concatenate([wih1[g], b1[g]], axis=0))         # layer1
        pre_cols.append(jnp.concatenate([zin, b2[g]], axis=0))             # layer2
        pre_cols.append(jnp.concatenate([zin, b3[g]], axis=0))             # layer3
    w_pre = jnp.concatenate(pre_cols, axis=1)                              # (12, 96)

    # Pre-scale the sigmoid columns by 0.5 so sigmoid(z) = 0.5*tanh(z/2)+0.5
    # needs only one tanh over all 96 gate columns inside the kernel.
    scale = jnp.concatenate([jnp.full((9 * H,), 0.5, jnp.float32),
                             jnp.ones((3 * H,), jnp.float32)])[None, :]
    w_rec = w_rec * scale
    w_pre = w_pre * scale

    # fc1 ∘ fc2 folded (exact: no nonlinearity between), lifted to the fused
    # 24-lane hidden layout (only the h3 lanes contribute).
    wfc = params["wfc1"].T @ params["wfc2"].T                              # (8, 1)
    wfc_full = jnp.concatenate(
        [jnp.zeros((2 * H, 1), jnp.float32), wfc], axis=0)                 # (24, 1)
    bfc = (params["bfc1"][None, :] @ params["wfc2"].T
           + params["bfc2"][None, :])                                      # (1, 1)
    return w_pre, w_rec, wfc_full, bfc


def init_params(key):
    """Deterministic synthetic parameters with PyTorch-compatible shapes."""
    ks = jax.random.split(key, 16)
    s = 0.1

    def u(k, shape):
        return (jax.random.uniform(k, shape, jnp.float32) * 2.0 - 1.0) * s

    p = {}
    # LSTMCell 1: W_ih (4H, 11), W_hh (4H, 8), b = b_ih + b_hh (4H,)
    p["wih1"] = u(ks[0], (4 * HIDDEN, IN_FEAT))
    p["whh1"] = u(ks[1], (4 * HIDDEN, HIDDEN))
    p["b1"] = u(ks[2], (4 * HIDDEN,)) + u(ks[3], (4 * HIDDEN,))
    # LSTMCell 2
    p["wih2"] = u(ks[4], (4 * HIDDEN, HIDDEN))
    p["whh2"] = u(ks[5], (4 * HIDDEN, HIDDEN))
    p["b2"] = u(ks[6], (4 * HIDDEN,)) + u(ks[7], (4 * HIDDEN,))
    # LSTMCell 3
    p["wih3"] = u(ks[8], (4 * HIDDEN, HIDDEN))
    p["whh3"] = u(ks[9], (4 * HIDDEN, HIDDEN))
    p["b3"] = u(ks[10], (4 * HIDDEN,)) + u(ks[11], (4 * HIDDEN,))
    # fc1: (4, 8), fc2: (1, 4)
    p["wfc1"] = u(ks[12], (4, HIDDEN))
    p["bfc1"] = u(ks[13], (4,))
    p["wfc2"] = u(ks[14], (1, 4))
    p["bfc2"] = u(ks[15], (1,))
    return p


@jax.jit
def model5_forward(x, params):
    """x: (T, B, 11) float32 -> (B, 1) float32."""
    T, B, F = x.shape
    assert F == IN_FEAT and T >= 5, "model5 requires 11 features and T >= 5"

    x_flat = x.reshape(T * B, F).astype(jnp.float32)
    x_aug = jnp.concatenate(
        [x_flat, jnp.ones((T * B, 1), jnp.float32)], axis=1)      # (T*B, 12)

    w_pre, w_rec, wfc, bfc = _build_fused_weights(params)

    vmem = pl.BlockSpec(memory_space=pltpu.MemorySpace.VMEM)
    kernel = functools.partial(model5_kernel, T, B)
    out = pl.pallas_call(
        kernel,
        out_shape=jax.ShapeDtypeStruct((B, 1), jnp.float32),
        in_specs=[vmem] * 5,
        out_specs=vmem,
    )(x_aug, w_pre, w_rec, wfc, bfc)
    return out


def _reference(x, params):
    """Pure-JAX reference of the PyTorch forward (dropout = identity)."""
    T, B, _ = x.shape

    def cell(xt, h, c, wih, whh, b):
        gates = xt @ wih.T + h @ whh.T + b
        i = jax.nn.sigmoid(gates[:, 0:8])
        f = jax.nn.sigmoid(gates[:, 8:16])
        g = jnp.tanh(gates[:, 16:24])
        o = jax.nn.sigmoid(gates[:, 24:32])
        c = f * c + i * g
        return o * jnp.tanh(c), c

    h1 = c1 = h2 = c2 = h3 = c3 = jnp.zeros((B, 8), jnp.float32)

    def step(xt, st):
        h1, c1, h2, c2, h3, c3 = st
        h1, c1 = cell(xt, h1, c1, params["wih1"], params["whh1"], params["b1"])
        h2, c2 = cell(h1, h2, c2, params["wih2"], params["whh2"], params["b2"])
        h3, c3 = cell(h2, h3, c3, params["wih3"], params["whh3"], params["b3"])
        return (h1, c1, h2, c2, h3, c3)

    st = (h1, c1, h2, c2, h3, c3)
    for i in range(T):
        st = step(x[i], st)
    st = step(x[4], st)
    h3 = st[4]
    z = h3 @ params["wfc1"].T + params["bfc1"]
    z = z @ params["wfc2"].T + params["bfc2"]
    return z


if __name__ == "__main__":
    key = jax.random.PRNGKey(0)
    k_x, k_p = jax.random.split(key)

    T, B = 8, 8  # seq_length, batch (T >= 5 required by the extra x[4] step)
    x = jax.random.normal(k_x, (T, B, IN_FEAT), dtype=jnp.float32)
    params = init_params(k_p)

    out = model5_forward(x, params)
    out = jax.block_until_ready(out)

    ref = _reference(x, params)
    assert out.shape == (B, 1)
    assert jnp.allclose(out, ref, atol=3e-5, rtol=1e-5), (out, ref)

    print("KERNEL_OK")
</pallas_src>

<mosaic_0001>
module attributes {stable_mosaic.version = 11 : i64} {
  func.func @model5_kernel(%arg0: memref<64x12xf32, #tpu.memory_space<vmem>>, %arg1: memref<12x96xf32, #tpu.memory_space<vmem>>, %arg2: memref<24x96xf32, #tpu.memory_space<vmem>>, %arg3: memref<24x1xf32, #tpu.memory_space<vmem>>, %arg4: memref<1x1xf32, #tpu.memory_space<vmem>>, %arg5: memref<8x1xf32, #tpu.memory_space<vmem>>) attributes {dimension_semantics = [], scalar_prefetch = 0 : i64, scratch_operands = 0 : i64, tpu.core_type = #tpu.core_type<tc>} {
    %c0 = arith.constant 0 : index
    %c0_0 = arith.constant 0 : index
    %0 = vector.load %arg0[%c0, %c0_0] : memref<64x12xf32, #tpu.memory_space<vmem>>, vector<64x12xf32>
    %c0_1 = arith.constant 0 : index
    %c0_2 = arith.constant 0 : index
    %1 = vector.load %arg1[%c0_1, %c0_2] : memref<12x96xf32, #tpu.memory_space<vmem>>, vector<12x96xf32>
    %cst = arith.constant dense<0.000000e+00> : vector<64x96xf32>
    %2 = tpu.matmul %0, %1, %cst {dimension_numbers = #tpu.dot_dimension_numbers<[1], [0], [0], [1], [0, 0, 1, 1], [], []>} : vector<64x12xf32>, vector<12x96xf32>, vector<64x96xf32> -> vector<64x96xf32>
    %c0_3 = arith.constant 0 : index
    %c0_4 = arith.constant 0 : index
    %3 = vector.load %arg2[%c0_3, %c0_4] : memref<24x96xf32, #tpu.memory_space<vmem>>, vector<24x96xf32>
    %cst_5 = arith.constant 0.000000e+00 : f32
    %4 = vector.broadcast %cst_5 : f32 to vector<8x24xf32>
    %cst_6 = arith.constant 0.000000e+00 : f32
    %5 = vector.broadcast %cst_6 : f32 to vector<8x24xf32>
    %6 = tpu.iota {dimensions = array<i32: 1>} : vector<8x24xi32>
    %7 = vector.extract_strided_slice %2 {offsets = [0, 0], sizes = [8, 96], strides = [1, 1]} : vector<64x96xf32> to vector<8x96xf32>
    %cst_7 = arith.constant dense<0.000000e+00> : vector<8x96xf32>
    %8 = tpu.matmul %4, %3, %cst_7 {dimension_numbers = #tpu.dot_dimension_numbers<[1], [0], [0], [1], [0, 0, 1, 1], [], []>} : vector<8x24xf32>, vector<24x96xf32>, vector<8x96xf32> -> vector<8x96xf32>
    %9 = arith.addf %7, %8 : vector<8x96xf32>
    %10 = math.tanh %9 : vector<8x96xf32>
    %11 = vector.extract_strided_slice %10 {offsets = [0, 0], sizes = [8, 72], strides = [1, 1]} : vector<8x96xf32> to vector<8x72xf32>
    %cst_8 = arith.constant 5.000000e-01 : f32
    %12 = vector.broadcast %cst_8 : f32 to vector<8x72xf32>
    %13 = arith.mulf %12, %11 : vector<8x72xf32>
    %cst_9 = arith.constant 5.000000e-01 : f32
    %14 = vector.broadcast %cst_9 : f32 to vector<8x72xf32>
    %15 = arith.addf %13, %14 : vector<8x72xf32>
    %16 = vector.extract_strided_slice %15 {offsets = [0, 0], sizes = [8, 24], strides = [1, 1]} : vector<8x72xf32> to vector<8x24xf32>
    %17 = vector.extract_strided_slice %15 {offsets = [0, 24], sizes = [8, 24], strides = [1, 1]} : vector<8x72xf32> to vector<8x24xf32>
    %18 = vector.extract_strided_slice %15 {offsets = [0, 48], sizes = [8, 24], strides = [1, 1]} : vector<8x72xf32> to vector<8x24xf32>
    %19 = vector.extract_strided_slice %10 {offsets = [0, 72], sizes = [8, 24], strides = [1, 1]} : vector<8x96xf32> to vector<8x24xf32>
    %20 = arith.mulf %17, %5 : vector<8x24xf32>
    %21 = arith.mulf %16, %19 : vector<8x24xf32>
    %22 = arith.addf %20, %21 : vector<8x24xf32>
    %23 = math.tanh %22 : vector<8x24xf32>
    %24 = arith.mulf %18, %23 : vector<8x24xf32>
    %c8_i32 = arith.constant 8 : i32
    %25 = vector.broadcast %c8_i32 : i32 to vector<8x24xi32>
    %26 = arith.cmpi slt, %6, %25 : vector<8x24xi32>
    %27 = arith.select %26, %24, %4 : vector<8x24xi1>, vector<8x24xf32>
    %28 = arith.select %26, %22, %5 : vector<8x24xi1>, vector<8x24xf32>
    %29 = vector.extract_strided_slice %2 {offsets = [8, 0], sizes = [8, 96], strides = [1, 1]} : vector<64x96xf32> to vector<8x96xf32>
    %cst_10 = arith.constant dense<0.000000e+00> : vector<8x96xf32>
    %30 = tpu.matmul %27, %3, %cst_10 {dimension_numbers = #tpu.dot_dimension_numbers<[1], [0], [0], [1], [0, 0, 1, 1], [], []>} : vector<8x24xf32>, vector<24x96xf32>, vector<8x96xf32> -> vector<8x96xf32>
    %31 = arith.addf %29, %30 : vector<8x96xf32>
    %32 = math.tanh %31 : vector<8x96xf32>
    %33 = vector.extract_strided_slice %32 {offsets = [0, 0], sizes = [8, 72], strides = [1, 1]} : vector<8x96xf32> to vector<8x72xf32>
    %cst_11 = arith.constant 5.000000e-01 : f32
    %34 = vector.broadcast %cst_11 : f32 to vector<8x72xf32>
    %35 = arith.mulf %34, %33 : vector<8x72xf32>
    %cst_12 = arith.constant 5.000000e-01 : f32
    %36 = vector.broadcast %cst_12 : f32 to vector<8x72xf32>
    %37 = arith.addf %35, %36 : vector<8x72xf32>
    %38 = vector.extract_strided_slice %37 {offsets = [0, 0], sizes = [8, 24], strides = [1, 1]} : vector<8x72xf32> to vector<8x24xf32>
    %39 = vector.extract_strided_slice %37 {offsets = [0, 24], sizes = [8, 24], strides = [1, 1]} : vector<8x72xf32> to vector<8x24xf32>
    %40 = vector.extract_strided_slice %37 {offsets = [0, 48], sizes = [8, 24], strides = [1, 1]} : vector<8x72xf32> to vector<8x24xf32>
    %41 = vector.extract_strided_slice %32 {offsets = [0, 72], sizes = [8, 24], strides = [1, 1]} : vector<8x96xf32> to vector<8x24xf32>
    %42 = arith.mulf %39, %28 : vector<8x24xf32>
    %43 = arith.mulf %38, %41 : vector<8x24xf32>
    %44 = arith.addf %42, %43 : vector<8x24xf32>
    %45 = math.tanh %44 : vector<8x24xf32>
    %46 = arith.mulf %40, %45 : vector<8x24xf32>
    %c16_i32 = arith.constant 16 : i32
    %47 = vector.broadcast %c16_i32 : i32 to vector<8x24xi32>
    %48 = arith.cmpi slt, %6, %47 : vector<8x24xi32>
    %49 = arith.select %48, %46, %27 : vector<8x24xi1>, vector<8x24xf32>
    %50 = arith.select %48, %44, %28 : vector<8x24xi1>, vector<8x24xf32>
    %51 = vector.extract_strided_slice %2 {offsets = [16, 0], sizes = [8, 96], strides = [1, 1]} : vector<64x96xf32> to vector<8x96xf32>
    %cst_13 = arith.constant dense<0.000000e+00> : vector<8x96xf32>
    %52 = tpu.matmul %49, %3, %cst_13 {dimension_numbers = #tpu.dot_dimension_numbers<[1], [0], [0], [1], [0, 0, 1, 1], [], []>} : vector<8x24xf32>, vector<24x96xf32>, vector<8x96xf32> -> vector<8x96xf32>
    %53 = arith.addf %51, %52 : vector<8x96xf32>
    %54 = math.tanh %53 : vector<8x96xf32>
    %55 = vector.extract_strided_slice %54 {offsets = [0, 0], sizes = [8, 72], strides = [1, 1]} : vector<8x96xf32> to vector<8x72xf32>
    %cst_14 = arith.constant 5.000000e-01 : f32
    %56 = vector.broadcast %cst_14 : f32 to vector<8x72xf32>
    %57 = arith.mulf %56, %55 : vector<8x72xf32>
    %cst_15 = arith.constant 5.000000e-01 : f32
    %58 = vector.broadcast %cst_15 : f32 to vector<8x72xf32>
    %59 = arith.addf %57, %58 : vector<8x72xf32>
    %60 = vector.extract_strided_slice %59 {offsets = [0, 0], sizes = [8, 24], strides = [1, 1]} : vector<8x72xf32> to vector<8x24xf32>
    %61 = vector.extract_strided_slice %59 {offsets = [0, 24], sizes = [8, 24], strides = [1, 1]} : vector<8x72xf32> to vector<8x24xf32>
    %62 = vector.extract_strided_slice %59 {offsets = [0, 48], sizes = [8, 24], strides = [1, 1]} : vector<8x72xf32> to vector<8x24xf32>
    %63 = vector.extract_strided_slice %54 {offsets = [0, 72], sizes = [8, 24], strides = [1, 1]} : vector<8x96xf32> to vector<8x24xf32>
    %64 = arith.mulf %61, %50 : vector<8x24xf32>
    %65 = arith.mulf %60, %63 : vector<8x24xf32>
    %66 = arith.addf %64, %65 : vector<8x24xf32>
    %67 = math.tanh %66 : vector<8x24xf32>
    %68 = arith.mulf %62, %67 : vector<8x24xf32>
    %69 = vector.extract_strided_slice %2 {offsets = [24, 0], sizes = [8, 96], strides = [1, 1]} : vector<64x96xf32> to vector<8x96xf32>
    %cst_16 = arith.constant dense<0.000000e+00> : vector<8x96xf32>
    %70 = tpu.matmul %68, %3, %cst_16 {dimension_numbers = #tpu.dot_dimension_numbers<[1], [0], [0], [1], [0, 0, 1, 1], [], []>} : vector<8x24xf32>, vector<24x96xf32>, vector<8x96xf32> -> vector<8x96xf32>
    %71 = arith.addf %69, %70 : vector<8x96xf32>
    %72 = math.tanh %71 : vector<8x96xf32>
    %73 = vector.extract_strided_slice %72 {offsets = [0, 0], sizes = [8, 72], strides = [1, 1]} : vector<8x96xf32> to vector<8x72xf32>
    %cst_17 = arith.constant 5.000000e-01 : f32
    %74 = vector.broadcast %cst_17 : f32 to vector<8x72xf32>
    %75 = arith.mulf %74, %73 : vector<8x72xf32>
    %cst_18 = arith.constant 5.000000e-01 : f32
    %76 = vector.broadcast %cst_18 : f32 to vector<8x72xf32>
    %77 = arith.addf %75, %76 : vector<8x72xf32>
    %78 = vector.extract_strided_slice %77 {offsets = [0, 0], sizes = [8, 24], strides = [1, 1]} : vector<8x72xf32> to vector<8x24xf32>
    %79 = vector.extract_strided_slice %77 {offsets = [0, 24], sizes = [8, 24], strides = [1, 1]} : vector<8x72xf32> to vector<8x24xf32>
    %80 = vector.extract_strided_slice %77 {offsets = [0, 48], sizes = [8, 24], strides = [1, 1]} : vector<8x72xf32> to vector<8x24xf32>
    %81 = vector.extract_strided_slice %72 {offsets = [0, 72], sizes = [8, 24], strides = [1, 1]} : vector<8x96xf32> to vector<8x24xf32>
    %82 = arith.mulf %79, %66 : vector<8x24xf32>
    %83 = arith.mulf %78, %81 : vector<8x24xf32>
    %84 = arith.addf %82, %83 : vector<8x24xf32>
    %85 = math.tanh %84 : vector<8x24xf32>
    %86 = arith.mulf %80, %85 : vector<8x24xf32>
    %87 = vector.extract_strided_slice %2 {offsets = [32, 0], sizes = [8, 96], strides = [1, 1]} : vector<64x96xf32> to vector<8x96xf32>
    %cst_19 = arith.constant dense<0.000000e+00> : vector<8x96xf32>
    %88 = tpu.matmul %86, %3, %cst_19 {dimension_numbers = #tpu.dot_dimension_numbers<[1], [0], [0], [1], [0, 0, 1, 1], [], []>} : vector<8x24xf32>, vector<24x96xf32>, vector<8x96xf32> -> vector<8x96xf32>
    %89 = arith.addf %87, %88 : vector<8x96xf32>
    %90 = math.tanh %89 : vector<8x96xf32>
    %91 = vector.extract_strided_slice %90 {offsets = [0, 0], sizes = [8, 72], strides = [1, 1]} : vector<8x96xf32> to vector<8x72xf32>
    %cst_20 = arith.constant 5.000000e-01 : f32
    %92 = vector.broadcast %cst_20 : f32 to vector<8x72xf32>
    %93 = arith.mulf %92, %91 : vector<8x72xf32>
    %cst_21 = arith.constant 5.000000e-01 : f32
    %94 = vector.broadcast %cst_21 : f32 to vector<8x72xf32>
    %95 = arith.addf %93, %94 : vector<8x72xf32>
    %96 = vector.extract_strided_slice %95 {offsets = [0, 0], sizes = [8, 24], strides = [1, 1]} : vector<8x72xf32> to vector<8x24xf32>
    %97 = vector.extract_strided_slice %95 {offsets = [0, 24], sizes = [8, 24], strides = [1, 1]} : vector<8x72xf32> to vector<8x24xf32>
    %98 = vector.extract_strided_slice %95 {offsets = [0, 48], sizes = [8, 24], strides = [1, 1]} : vector<8x72xf32> to vector<8x24xf32>
    %99 = vector.extract_strided_slice %90 {offsets = [0, 72], sizes = [8, 24], strides = [1, 1]} : vector<8x96xf32> to vector<8x24xf32>
    %100 = arith.mulf %97, %84 : vector<8x24xf32>
    %101 = arith.mulf %96, %99 : vector<8x24xf32>
    %102 = arith.addf %100, %101 : vector<8x24xf32>
    %103 = math.tanh %102 : vector<8x24xf32>
    %104 = arith.mulf %98, %103 : vector<8x24xf32>
    %105 = vector.extract_strided_slice %2 {offsets = [40, 0], sizes = [8, 96], strides = [1, 1]} : vector<64x96xf32> to vector<8x96xf32>
    %cst_22 = arith.constant dense<0.000000e+00> : vector<8x96xf32>
    %106 = tpu.matmul %104, %3, %cst_22 {dimension_numbers = #tpu.dot_dimension_numbers<[1], [0], [0], [1], [0, 0, 1, 1], [], []>} : vector<8x24xf32>, vector<24x96xf32>, vector<8x96xf32> -> vector<8x96xf32>
    %107 = arith.addf %105, %106 : vector<8x96xf32>
    %108 = math.tanh %107 : vector<8x96xf32>
    %109 = vector.extract_strided_slice %108 {offsets = [0, 0], sizes = [8, 72], strides = [1, 1]} : vector<8x96xf32> to vector<8x72xf32>
    %cst_23 = arith.constant 5.000000e-01 : f32
    %110 = vector.broadcast %cst_23 : f32 to vector<8x72xf32>
    %111 = arith.mulf %110, %109 : vector<8x72xf32>
    %cst_24 = arith.constant 5.000000e-01 : f32
    %112 = vector.broadcast %cst_24 : f32 to vector<8x72xf32>
    %113 = arith.addf %111, %112 : vector<8x72xf32>
    %114 = vector.extract_strided_slice %113 {offsets = [0, 0], sizes = [8, 24], strides = [1, 1]} : vector<8x72xf32> to vector<8x24xf32>
    %115 = vector.extract_strided_slice %113 {offsets = [0, 24], sizes = [8, 24], strides = [1, 1]} : vector<8x72xf32> to vector<8x24xf32>
    %116 = vector.extract_strided_slice %113 {offsets = [0, 48], sizes = [8, 24], strides = [1, 1]} : vector<8x72xf32> to vector<8x24xf32>
    %117 = vector.extract_strided_slice %108 {offsets = [0, 72], sizes = [8, 24], strides = [1, 1]} : vector<8x96xf32> to vector<8x24xf32>
    %118 = arith.mulf %115, %102 : vector<8x24xf32>
    %119 = arith.mulf %114, %117 : vector<8x24xf32>
    %120 = arith.addf %118, %119 : vector<8x24xf32>
    %121 = math.tanh %120 : vector<8x24xf32>
    %122 = arith.mulf %116, %121 : vector<8x24xf32>
    %123 = vector.extract_strided_slice %2 {offsets = [48, 0], sizes = [8, 96], strides = [1, 1]} : vector<64x96xf32> to vector<8x96xf32>
    %cst_25 = arith.constant dense<0.000000e+00> : vector<8x96xf32>
    %124 = tpu.matmul %122, %3, %cst_25 {dimension_numbers = #tpu.dot_dimension_numbers<[1], [0], [0], [1], [0, 0, 1, 1], [], []>} : vector<8x24xf32>, vector<24x96xf32>, vector<8x96xf32> -> vector<8x96xf32>
    %125 = arith.addf %123, %124 : vector<8x96xf32>
    %126 = math.tanh %125 : vector<8x96xf32>
    %127 = vector.extract_strided_slice %126 {offsets = [0, 0], sizes = [8, 72], strides = [1, 1]} : vector<8x96xf32> to vector<8x72xf32>
    %cst_26 = arith.constant 5.000000e-01 : f32
    %128 = vector.broadcast %cst_26 : f32 to vector<8x72xf32>
    %129 = arith.mulf %128, %127 : vector<8x72xf32>
    %cst_27 = arith.constant 5.000000e-01 : f32
    %130 = vector.broadcast %cst_27 : f32 to vector<8x72xf32>
    %131 = arith.addf %129, %130 : vector<8x72xf32>
    %132 = vector.extract_strided_slice %131 {offsets = [0, 0], sizes = [8, 24], strides = [1, 1]} : vector<8x72xf32> to vector<8x24xf32>
    %133 = vector.extract_strided_slice %131 {offsets = [0, 24], sizes = [8, 24], strides = [1, 1]} : vector<8x72xf32> to vector<8x24xf32>
    %134 = vector.extract_strided_slice %131 {offsets = [0, 48], sizes = [8, 24], strides = [1, 1]} : vector<8x72xf32> to vector<8x24xf32>
    %135 = vector.extract_strided_slice %126 {offsets = [0, 72], sizes = [8, 24], strides = [1, 1]} : vector<8x96xf32> to vector<8x24xf32>
    %136 = arith.mulf %133, %120 : vector<8x24xf32>
    %137 = arith.mulf %132, %135 : vector<8x24xf32>
    %138 = arith.addf %136, %137 : vector<8x24xf32>
    %139 = math.tanh %138 : vector<8x24xf32>
    %140 = arith.mulf %134, %139 : vector<8x24xf32>
    %141 = vector.extract_strided_slice %2 {offsets = [56, 0], sizes = [8, 96], strides = [1, 1]} : vector<64x96xf32> to vector<8x96xf32>
    %cst_28 = arith.constant dense<0.000000e+00> : vector<8x96xf32>
    %142 = tpu.matmul %140, %3, %cst_28 {dimension_numbers = #tpu.dot_dimension_numbers<[1], [0], [0], [1], [0, 0, 1, 1], [], []>} : vector<8x24xf32>, vector<24x96xf32>, vector<8x96xf32> -> vector<8x96xf32>
    %143 = arith.addf %141, %142 : vector<8x96xf32>
    %144 = math.tanh %143 : vector<8x96xf32>
    %145 = vector.extract_strided_slice %144 {offsets = [0, 0], sizes = [8, 72], strides = [1, 1]} : vector<8x96xf32> to vector<8x72xf32>
    %cst_29 = arith.constant 5.000000e-01 : f32
    %146 = vector.broadcast %cst_29 : f32 to vector<8x72xf32>
    %147 = arith.mulf %146, %145 : vector<8x72xf32>
    %cst_30 = arith.constant 5.000000e-01 : f32
    %148 = vector.broadcast %cst_30 : f32 to vector<8x72xf32>
    %149 = arith.addf %147, %148 : vector<8x72xf32>
    %150 = vector.extract_strided_slice %149 {offsets = [0, 0], sizes = [8, 24], strides = [1, 1]} : vector<8x72xf32> to vector<8x24xf32>
    %151 = vector.extract_strided_slice %149 {offsets = [0, 24], sizes = [8, 24], strides = [1, 1]} : vector<8x72xf32> to vector<8x24xf32>
    %152 = vector.extract_strided_slice %149 {offsets = [0, 48], sizes = [8, 24], strides = [1, 1]} : vector<8x72xf32> to vector<8x24xf32>
    %153 = vector.extract_strided_slice %144 {offsets = [0, 72], sizes = [8, 24], strides = [1, 1]} : vector<8x96xf32> to vector<8x24xf32>
    %154 = arith.mulf %151, %138 : vector<8x24xf32>
    %155 = arith.mulf %150, %153 : vector<8x24xf32>
    %156 = arith.addf %154, %155 : vector<8x24xf32>
    %157 = math.tanh %156 : vector<8x24xf32>
    %158 = arith.mulf %152, %157 : vector<8x24xf32>
    %159 = vector.extract_strided_slice %2 {offsets = [32, 0], sizes = [8, 96], strides = [1, 1]} : vector<64x96xf32> to vector<8x96xf32>
    %cst_31 = arith.constant dense<0.000000e+00> : vector<8x96xf32>
    %160 = tpu.matmul %158, %3, %cst_31 {dimension_numbers = #tpu.dot_dimension_numbers<[1], [0], [0], [1], [0, 0, 1, 1], [], []>} : vector<8x24xf32>, vector<24x96xf32>, vector<8x96xf32> -> vector<8x96xf32>
    %161 = arith.addf %159, %160 : vector<8x96xf32>
    %162 = math.tanh %161 : vector<8x96xf32>
    %163 = vector.extract_strided_slice %162 {offsets = [0, 0], sizes = [8, 72], strides = [1, 1]} : vector<8x96xf32> to vector<8x72xf32>
    %cst_32 = arith.constant 5.000000e-01 : f32
    %164 = vector.broadcast %cst_32 : f32 to vector<8x72xf32>
    %165 = arith.mulf %164, %163 : vector<8x72xf32>
    %cst_33 = arith.constant 5.000000e-01 : f32
    %166 = vector.broadcast %cst_33 : f32 to vector<8x72xf32>
    %167 = arith.addf %165, %166 : vector<8x72xf32>
    %168 = vector.extract_strided_slice %167 {offsets = [0, 0], sizes = [8, 24], strides = [1, 1]} : vector<8x72xf32> to vector<8x24xf32>
    %169 = vector.extract_strided_slice %167 {offsets = [0, 24], sizes = [8, 24], strides = [1, 1]} : vector<8x72xf32> to vector<8x24xf32>
    %170 = vector.extract_strided_slice %167 {offsets = [0, 48], sizes = [8, 24], strides = [1, 1]} : vector<8x72xf32> to vector<8x24xf32>
    %171 = vector.extract_strided_slice %162 {offsets = [0, 72], sizes = [8, 24], strides = [1, 1]} : vector<8x96xf32> to vector<8x24xf32>
    %172 = arith.mulf %169, %156 : vector<8x24xf32>
    %173 = arith.mulf %168, %171 : vector<8x24xf32>
    %174 = arith.addf %172, %173 : vector<8x24xf32>
    %175 = math.tanh %174 : vector<8x24xf32>
    %176 = arith.mulf %170, %175 : vector<8x24xf32>
    %177 = vector.extract_strided_slice %2 {offsets = [32, 0], sizes = [8, 96], strides = [1, 1]} : vector<64x96xf32> to vector<8x96xf32>
    %cst_34 = arith.constant dense<0.000000e+00> : vector<8x96xf32>
    %178 = tpu.matmul %176, %3, %cst_34 {dimension_numbers = #tpu.dot_dimension_numbers<[1], [0], [0], [1], [0, 0, 1, 1], [], []>} : vector<8x24xf32>, vector<24x96xf32>, vector<8x96xf32> -> vector<8x96xf32>
    %179 = arith.addf %177, %178 : vector<8x96xf32>
    %180 = math.tanh %179 : vector<8x96xf32>
    %181 = vector.extract_strided_slice %180 {offsets = [0, 0], sizes = [8, 72], strides = [1, 1]} : vector<8x96xf32> to vector<8x72xf32>
    %cst_35 = arith.constant 5.000000e-01 : f32
    %182 = vector.broadcast %cst_35 : f32 to vector<8x72xf32>
    %183 = arith.mulf %182, %181 : vector<8x72xf32>
    %cst_36 = arith.constant 5.000000e-01 : f32
    %184 = vector.broadcast %cst_36 : f32 to vector<8x72xf32>
    %185 = arith.addf %183, %184 : vector<8x72xf32>
    %186 = vector.extract_strided_slice %185 {offsets = [0, 0], sizes = [8, 24], strides = [1, 1]} : vector<8x72xf32> to vector<8x24xf32>
    %187 = vector.extract_strided_slice %185 {offsets = [0, 24], sizes = [8, 24], strides = [1, 1]} : vector<8x72xf32> to vector<8x24xf32>
    %188 = vector.extract_strided_slice %185 {offsets = [0, 48], sizes = [8, 24], strides = [1, 1]} : vector<8x72xf32> to vector<8x24xf32>
    %189 = vector.extract_strided_slice %180 {offsets = [0, 72], sizes = [8, 24], strides = [1, 1]} : vector<8x96xf32> to vector<8x24xf32>
    %190 = arith.mulf %187, %174 : vector<8x24xf32>
    %191 = arith.mulf %186, %189 : vector<8x24xf32>
    %192 = arith.addf %190, %191 : vector<8x24xf32>
    %193 = math.tanh %192 : vector<8x24xf32>
    %194 = arith.mulf %188, %193 : vector<8x24xf32>
    %195 = vector.extract_strided_slice %2 {offsets = [32, 0], sizes = [8, 96], strides = [1, 1]} : vector<64x96xf32> to vector<8x96xf32>
    %cst_37 = arith.constant dense<0.000000e+00> : vector<8x96xf32>
    %196 = tpu.matmul %194, %3, %cst_37 {dimension_numbers = #tpu.dot_dimension_numbers<[1], [0], [0], [1], [0, 0, 1, 1], [], []>} : vector<8x24xf32>, vector<24x96xf32>, vector<8x96xf32> -> vector<8x96xf32>
    %197 = arith.addf %195, %196 : vector<8x96xf32>
    %198 = math.tanh %197 : vector<8x96xf32>
    %199 = vector.extract_strided_slice %198 {offsets = [0, 0], sizes = [8, 72], strides = [1, 1]} : vector<8x96xf32> to vector<8x72xf32>
    %cst_38 = arith.constant 5.000000e-01 : f32
    %200 = vector.broadcast %cst_38 : f32 to vector<8x72xf32>
    %201 = arith.mulf %200, %199 : vector<8x72xf32>
    %cst_39 = arith.constant 5.000000e-01 : f32
    %202 = vector.broadcast %cst_39 : f32 to vector<8x72xf32>
    %203 = arith.addf %201, %202 : vector<8x72xf32>
    %204 = vector.extract_strided_slice %203 {offsets = [0, 0], sizes = [8, 24], strides = [1, 1]} : vector<8x72xf32> to vector<8x24xf32>
    %205 = vector.extract_strided_slice %203 {offsets = [0, 24], sizes = [8, 24], strides = [1, 1]} : vector<8x72xf32> to vector<8x24xf32>
    %206 = vector.extract_strided_slice %203 {offsets = [0, 48], sizes = [8, 24], strides = [1, 1]} : vector<8x72xf32> to vector<8x24xf32>
    %207 = vector.extract_strided_slice %198 {offsets = [0, 72], sizes = [8, 24], strides = [1, 1]} : vector<8x96xf32> to vector<8x24xf32>
    %208 = arith.mulf %205, %192 : vector<8x24xf32>
    %209 = arith.mulf %204, %207 : vector<8x24xf32>
    %210 = arith.addf %208, %209 : vector<8x24xf32>
    %211 = math.tanh %210 : vector<8x24xf32>
    %212 = arith.mulf %206, %211 : vector<8x24xf32>
    %c0_40 = arith.constant 0 : index
    %c0_41 = arith.constant 0 : index
    %213 = vector.load %arg3[%c0_40, %c0_41] : memref<24x1xf32, #tpu.memory_space<vmem>>, vector<24x1xf32>
    %cst_42 = arith.constant dense<0.000000e+00> : vector<8x1xf32>
    %214 = tpu.matmul %212, %213, %cst_42 {dimension_numbers = #tpu.dot_dimension_numbers<[1], [0], [0], [1], [0, 0, 1, 1], [], []>} : vector<8x24xf32>, vector<24x1xf32>, vector<8x1xf32> -> vector<8x1xf32>
    %c0_43 = arith.constant 0 : index
    %c0_44 = arith.constant 0 : index
    %215 = vector.load %arg4[%c0_43, %c0_44] : memref<1x1xf32, #tpu.memory_space<vmem>>, vector<1x1xf32>
    %216 = vector.broadcast %215 : vector<1x1xf32> to vector<8x1xf32>
    %217 = arith.addf %214, %216 : vector<8x1xf32>
    %c0_45 = arith.constant 0 : index
    %c0_46 = arith.constant 0 : index
    %218 = vector.load %arg5[%c0_45, %c0_46] : memref<8x1xf32, #tpu.memory_space<vmem>>, vector<8x1xf32>
    tpu.vector_store %arg5[%c0_45, %c0_46], %217 {strides = array<i32>} : memref<8x1xf32, #tpu.memory_space<vmem>>, vector<8x1xf32>,
    return
  }
}

</mosaic_0001>

<llo_original>
// kernel: model5_forward.1
$region0: #{model5_forward.1}
  #allocation0 [shape = 'u32[]', space=smem, size = 0x4, offset = 0x4, fixed_abs, tag = 'smem constant byte address 0x4 - core index']
  #allocation1 [shape = 'u32[144,128]{1,0:T(1,128)}', space=vmem, size = 0x12000, scoped, tag = 'internal scratch']
  #allocation2 [shape = 'f32[1,1]{1,0:T(1,128)S(1)}', space=vmem, size = 0x200, scoped, tag = 'scoped memory for model5_forward.1']
  %s0 = inlined_call_operand.vmem [shape: f32[64,12], index: 0, kind: input, shape index: {}]
  %s1 = inlined_call_operand.vmem [shape: f32[12,96], index: 1, kind: input, shape index: {}]
  %s2 = inlined_call_operand.vmem [shape: f32[24,96], index: 2, kind: input, shape index: {}]
  %s3 = inlined_call_operand.vmem [shape: f32[24,1], index: 3, kind: input, shape index: {}]
  %s4 = inlined_call_operand.<no memory space> [shape: f32[1,1], index: 4, kind: input, shape index: {}]
  %s5 = inlined_call_operand.vmem [shape: f32[8,1], index: 5, kind: output, shape index: {}]
  %s6 = sld [smem:[#allocation0]]
  $region30: #{model5_forward.1} parent=0
    _
  %s8 = ssub.s32 1, %s6
  %s9 = scalar_select 0, %s8, %s6
  %v10 = vstv %s4
  %11 = vst [vmem:[#allocation2] sm:$0x1] %v10
  // Predicated region
  $region2: #{model5_forward.1} parent=0 // pred_check
    _
  $region3: #{model5_forward.1} parent=0 // pred_check_branch
    %13 = sbr.rel (0) target = $region5
  $region4: #{model5_forward.1} parent=0 // pred_region
    _
  $region5: #{model5_forward.1} parent=0 // pred_fallthru
    _
  // Predicated region
  $region6: #{model5_forward.1} parent=0 // pred_check
    _
  $region7: #{model5_forward.1} parent=0 // pred_check_branch
    %15 = sbr.rel (0) target = $region9
  $region8: #{model5_forward.1} parent=0 // pred_region
    _
  $region9: #{model5_forward.1} parent=0 // pred_fallthru
    _
  // Predicated region
  $region10: #{model5_forward.1} parent=0 // pred_check
    _
  $region11: #{model5_forward.1} parent=0 // pred_check_branch
    %17 = sbr.rel (0) target = $region13
  $region12: #{model5_forward.1} parent=0 // pred_region
    _
  $region13: #{model5_forward.1} parent=0 // pred_fallthru
    _
  // Predicated region
  $region14: #{model5_forward.1} parent=0 // pred_check
    _
  $region15: #{model5_forward.1} parent=0 // pred_check_branch
    %19 = sbr.rel (0) target = $region17
  $region16: #{model5_forward.1} parent=0 // pred_region
    _
  $region17: #{model5_forward.1} parent=0 // pred_fallthru
    _
  // Predicated region
  $region18: #{model5_forward.1} parent=0 // pred_check
    _
  $region19: #{model5_forward.1} parent=0 // pred_check_branch
    %21 = sbr.rel (0) target = $region21
  $region20: #{model5_forward.1} parent=0 // pred_region
    _
  $region21: #{model5_forward.1} parent=0 // pred_fallthru
    _
  %v22 = vld [vmem:[%s0] sm:$0xff]
  %v23 = vld [vmem:[%s0 + $0x8] sm:$0xff]
  %v24 = vld [vmem:[%s0 + $0x10] sm:$0xff]
  %v25 = vld [vmem:[%s0 + $0x18] sm:$0xff]
  %v26 = vld [vmem:[%s0 + $0x20] sm:$0xff]
  %v27 = vld [vmem:[%s0 + $0x28] sm:$0xff]
  %v28 = vld [vmem:[%s0 + $0x30] sm:$0xff]
  %v29 = vld [vmem:[%s0 + $0x38] sm:$0xff]
  %v30 = vld [vmem:[%s1] sm:$0xff]
  %v31 = vld [vmem:[%s1 + $0x8] sm:$0xf]
  %vm32 = vcmask 97280
  %v34 = vsel %vm32, %v22, 0
  %v37 = vsel %vm32, %v23, 0
  %v40 = vsel %vm32, %v24, 0
  %v43 = vsel %vm32, %v25, 0
  %v46 = vsel %vm32, %v26, 0
  %v49 = vsel %vm32, %v27, 0
  %v52 = vsel %vm32, %v28, 0
  %v55 = vsel %vm32, %v29, 0
  %vm57 = vcmask 1043456
  %v59 = vsel %vm57, %v31, 0
  %61 = vmatprep.subr.mxu0 0.0
  %62 = vmatpush1.msra.mxu0 %v30
  %63 = vmatprep.subr.mxu0 0.0
  %64 = vmatpush1.msra.mxu0 %v59
  %65 = vmatprep.subr.mxu0 0.0
  %66 = vmatpush1.msra.mxu0 0.0
  %67 = vmatprep.subr.mxu0 0.0
  %68 = vmatpush1.msra.mxu0 0.0
  %69 = vmatprep.subr.mxu0 0.0
  %70 = vmatpush1.msra.mxu0 0.0
  %71 = vmatprep.subr.mxu0 0.0
  %72 = vmatpush1.msra.mxu0 0.0
  %73 = vmatprep.subr.mxu0 0.0
  %74 = vmatpush1.msra.mxu0 0.0
  %75 = vmatprep.subr.mxu0 0.0
  %76 = vmatpush1.msra.mxu0 0.0
  %77 = vmatprep.subr.mxu0 0.0
  %78 = vmatpush1.msra.mxu0 0.0
  %79 = vmatprep.subr.mxu0 0.0
  %80 = vmatpush1.msra.mxu0 0.0
  %81 = vmatprep.subr.mxu0 0.0
  %82 = vmatpush1.msra.mxu0 0.0
  %83 = vmatprep.subr.mxu0 0.0
  %84 = vmatpush1.msra.mxu0 0.0
  %85 = vmatprep.subr.mxu0 0.0
  %86 = vmatpush1.msra.mxu0 0.0
  %87 = vmatprep.subr.mxu0 0.0
  %88 = vmatpush1.msra.mxu0 0.0
  %89 = vmatprep.subr.mxu0 0.0
  %90 = vmatpush1.msra.mxu0 0.0
  %91 = vmatprep.subr.mxu0 0.0
  %92 = vmatpush1.msra.mxu0 0.0
  %93 = vmatprep.subr.mxu0 0.0
  %94 = vmatpush1.msra.mxu0 0.0
  %95 = vmatprep.subr.mxu0 0.0
  %96 = vmatpush1.msra.mxu0 0.0
  %97 = vmatprep.subr.mxu0 0.0
  %98 = vmatpush1.msra.mxu0 0.0
  %99 = vmatprep.subr.mxu0 0.0
  %100 = vmatpush1.msra.mxu0 0.0
  %101 = vmatprep.subr.mxu0 0.0
  %102 = vmatpush1.msra.mxu0 0.0
  %103 = vmatprep.subr.mxu0 0.0
  %104 = vmatpush1.msra.mxu0 0.0
  %105 = vmatprep.subr.mxu0 0.0
  %106 = vmatpush1.msra.mxu0 0.0
  %107 = vmatprep.subr.mxu0 0.0
  %108 = vmatpush1.msra.mxu0 0.0
  %109 = vmatprep.subr.mxu0 0.0
  %110 = vmatpush1.msra.mxu0 0.0
  %111 = vmatprep.subr.mxu0 0.0
  %112 = vmatpush1.msra.mxu0 0.0
  %113 = vmatprep.subr.mxu0 0.0
  %114 = vmatpush1.msra.mxu0 0.0
  %115 = vmatprep.subr.mxu0 0.0
  %116 = vmatpush1.msra.mxu0 0.0
  %117 = vmatprep.subr.mxu0 0.0
  %118 = vmatpush1.msra.mxu0 0.0
  %119 = vmatprep.subr.mxu0 0.0
  %120 = vmatpush1.msra.mxu0 0.0
  %121 = vmatprep.subr.mxu0 0.0
  %122 = vmatpush1.msra.mxu0 0.0
  %123 = vmatprep.subr.mxu0 0.0
  %124 = vmatpush1.msra.mxu0 0.0
  %125 = vmatprep.mubr.f32.mxu0 0.0
  %126 = vmatmul.mubr.f32.gmra.mrb[0].mxu0 %v34
  %v127 = vpop.f32.mrb[0].mxu0
  %v128 = vadd.f32 0.0, %v127
  %v129 = vpop.f32.mrb[0].mxu0
  %130 = vmatprep.mubr.f32.mxu0 0.0
  %131 = vmatmul.mubr.f32.gmra.mrb[0].mxu0 %v37
  %v132 = vpop.f32.mrb[0].mxu0
  %v133 = vadd.f32 0.0, %v132
  %v134 = vpop.f32.mrb[0].mxu0
  %135 = vmatprep.mubr.f32.mxu0 0.0
  %136 = vmatmul.mubr.f32.gmra.mrb[0].mxu0 %v40
  %v137 = vpop.f32.mrb[0].mxu0
  %v138 = vadd.f32 0.0, %v137
  %v139 = vpop.f32.mrb[0].mxu0
  %140 = vmatprep.mubr.f32.mxu0 0.0
  %141 = vmatmul.mubr.f32.gmra.mrb[0].mxu0 %v43
  %v142 = vpop.f32.mrb[0].mxu0
  %v143 = vadd.f32 0.0, %v142
  %v144 = vpop.f32.mrb[0].mxu0
  %145 = vmatprep.mubr.f32.mxu0 0.0
  %146 = vmatmul.mubr.f32.gmra.mrb[0].mxu0 %v46
  %v147 = vpop.f32.mrb[0].mxu0
  %v148 = vadd.f32 0.0, %v147
  %v149 = vpop.f32.mrb[0].mxu0
  %150 = vmatprep.mubr.f32.mxu0 0.0
  %151 = vmatmul.mubr.f32.gmra.mrb[0].mxu0 %v49
  %v152 = vpop.f32.mrb[0].mxu0
  %v153 = vadd.f32 0.0, %v152
  %v154 = vpop.f32.mrb[0].mxu0
  %155 = vmatprep.mubr.f32.mxu0 0.0
  %156 = vmatmul.mubr.f32.gmra.mrb[0].mxu0 %v52
  %v157 = vpop.f32.mrb[0].mxu0
  %v158 = vadd.f32 0.0, %v157
  %v159 = vpop.f32.mrb[0].mxu0
  %160 = vmatprep.mubr.f32.mxu0 0.0
  %161 = vmatmul.mubr.f32.gmra.mrb[0].mxu0 %v55
  %v162 = vpop.f32.mrb[0].mxu0
  %v163 = vadd.f32 0.0, %v162
  %v164 = vpop.f32.mrb[0].mxu0
  %165 = vdwg.mxu0
  %v166 = vld [vmem:[%s2] sm:$0xff]
  %v167 = vld [vmem:[%s2 + $0x8] sm:$0xff]
  %v168 = vld [vmem:[%s2 + $0x10] sm:$0xff]
  %v169 = vlaneseq
  %v170 = vand.u32 %v169, 127
  %vm171 = vcmask 195584
  %v173 = vsel %vm171, 0.0, 0
  %175 = vmatprep.subr.mxu0 0.0
  %176 = vmatpush1.msra.mxu0 %v166
  %177 = vmatprep.subr.mxu0 0.0
  %178 = vmatpush1.msra.mxu0 %v167
  %179 = vmatprep.subr.mxu0 0.0
  %180 = vmatpush1.msra.mxu0 %v168
  %181 = vmatprep.subr.mxu0 0.0
  %182 = vmatpush1.msra.mxu0 0.0
  %183 = vmatprep.subr.mxu0 0.0
  %184 = vmatpush1.msra.mxu0 0.0
  %185 = vmatprep.subr.mxu0 0.0
  %186 = vmatpush1.msra.mxu0 0.0
  %187 = vmatprep.subr.mxu0 0.0
  %188 = vmatpush1.msra.mxu0 0.0
  %189 = vmatprep.subr.mxu0 0.0
  %190 = vmatpush1.msra.mxu0 0.0
  %191 = vmatprep.subr.mxu0 0.0
  %192 = vmatpush1.msra.mxu0 0.0
  %193 = vmatprep.subr.mxu0 0.0
  %194 = vmatpush1.msra.mxu0 0.0
  %195 = vmatprep.subr.mxu0 0.0
  %196 = vmatpush1.msra.mxu0 0.0
  %197 = vmatprep.subr.mxu0 0.0
  %198 = vmatpush1.msra.mxu0 0.0
  %199 = vmatprep.subr.mxu0 0.0
  %200 = vmatpush1.msra.mxu0 0.0
  %201 = vmatprep.subr.mxu0 0.0
  %202 = vmatpush1.msra.mxu0 0.0
  %203 = vmatprep.subr.mxu0 0.0
  %204 = vmatpush1.msra.mxu0 0.0
  %205 = vmatprep.subr.mxu0 0.0
  %206 = vmatpush1.msra.mxu0 0.0
  %207 = vmatprep.subr.mxu0 0.0
  %208 = vmatpush1.msra.mxu0 0.0
  %209 = vmatprep.subr.mxu0 0.0
  %210 = vmatpush1.msra.mxu0 0.0
  %211 = vmatprep.subr.mxu0 0.0
  %212 = vmatpush1.msra.mxu0 0.0
  %213 = vmatprep.subr.mxu0 0.0
  %214 = vmatpush1.msra.mxu0 0.0
  %215 = vmatprep.subr.mxu0 0.0
  %216 = vmatpush1.msra.mxu0 0.0
  %217 = vmatprep.subr.mxu0 0.0
  %218 = vmatpush1.msra.mxu0 0.0
  %219 = vmatprep.subr.mxu0 0.0
  %220 = vmatpush1.msra.mxu0 0.0
  %221 = vmatprep.subr.mxu0 0.0
  %222 = vmatpush1.msra.mxu0 0.0
  %223 = vmatprep.subr.mxu0 0.0
  %224 = vmatpush1.msra.mxu0 0.0
  %225 = vmatprep.subr.mxu0 0.0
  %226 = vmatpush1.msra.mxu0 0.0
  %227 = vmatprep.subr.mxu0 0.0
  %228 = vmatpush1.msra.mxu0 0.0
  %229 = vmatprep.subr.mxu0 0.0
  %230 = vmatpush1.msra.mxu0 0.0
  %231 = vmatprep.subr.mxu0 0.0
  %232 = vmatpush1.msra.mxu0 0.0
  %233 = vmatprep.subr.mxu0 0.0
  %234 = vmatpush1.msra.mxu0 0.0
  %235 = vmatprep.subr.mxu0 0.0
  %236 = vmatpush1.msra.mxu0 0.0
  %237 = vmatprep.subr.mxu0 0.0
  %238 = vmatpush1.msra.mxu0 0.0
  %239 = vmatprep.mubr.f32.mxu0 0.0
  %240 = vmatmul.mubr.f32.gmra.mrb[0].mxu0 %v173
  %v241 = vpop.f32.mrb[0].mxu0
  %v242 = vadd.f32 0.0, %v241
  %v243 = vpop.f32.mrb[0].mxu0
  %244 = vdwg.mxu0
  %v245 = vadd.f32 %v128, %v242
  %v246 = vtanh.pop %v245
  %v247 = vmul.f32 %v246, 0.5
  %v248 = vadd.f32 %v247, 0.5
  %v249 = vmul.f32 %v248, 0.0
  %251 = vrot.lane.b32.xlu0 %v246, 56
  %v252 = vpop.permute.xlu0 %251
  %v254 = vmul.f32 %v248, %v252
  %256 = vrot.lane.b32.xlu0 %v254, 24
  %v257 = vpop.permute.xlu0 %256
  %v259 = vadd.f32 %v249, %v257
  %v260 = vtanh.pop %v259
  %262 = vrot.lane.b32.xlu0 %v260, 24
  %v263 = vpop.permute.xlu0 %262
  %v265 = vmul.f32 %v248, %v263
  %vm266 = vcmp.lt.s32.totalorder %v170, 8
  %268 = vrot.lane.b32.xlu0 %v265, 80
  %v269 = vpop.permute.xlu0 %268
  %v271 = vsel %vm266, %v269, 0.0
  %273 = vrot.lane.b32.xlu0 %v259, 104
  %v274 = vpop.permute.xlu0 %273
  %v276 = vsel %vm266, %v274, 0.0
  %v278 = vsel %vm171, %v271, 0
  %280 = vmatprep.subr.mxu0 0.0
  %281 = vmatpush1.msra.mxu0 %v166
  %282 = vmatprep.subr.mxu0 0.0
  %283 = vmatpush1.msra.mxu0 %v167
  %284 = vmatprep.subr.mxu0 0.0
  %285 = vmatpush1.msra.mxu0 %v168
  %286 = vmatprep.subr.mxu0 0.0
  %287 = vmatpush1.msra.mxu0 0.0
  %288 = vmatprep.subr.mxu0 0.0
  %289 = vmatpush1.msra.mxu0 0.0
  %290 = vmatprep.subr.mxu0 0.0
  %291 = vmatpush1.msra.mxu0 0.0
  %292 = vmatprep.subr.mxu0 0.0
  %293 = vmatpush1.msra.mxu0 0.0
  %294 = vmatprep.subr.mxu0 0.0
  %295 = vmatpush1.msra.mxu0 0.0
  %296 = vmatprep.subr.mxu0 0.0
  %297 = vmatpush1.msra.mxu0 0.0
  %298 = vmatprep.subr.mxu0 0.0
  %299 = vmatpush1.msra.mxu0 0.0
  %300 = vmatprep.subr.mxu0 0.0
  %301 = vmatpush1.msra.mxu0 0.0
  %302 = vmatprep.subr.mxu0 0.0
  %303 = vmatpush1.msra.mxu0 0.0
  %304 = vmatprep.subr.mxu0 0.0
  %305 = vmatpush1.msra.mxu0 0.0
  %306 = vmatprep.subr.mxu0 0.0
  %307 = vmatpush1.msra.mxu0 0.0
  %308 = vmatprep.subr.mxu0 0.0
  %309 = vmatpush1.msra.mxu0 0.0
  %310 = vmatprep.subr.mxu0 0.0
  %311 = vmatpush1.msra.mxu0 0.0
  %312 = vmatprep.subr.mxu0 0.0
  %313 = vmatpush1.msra.mxu0 0.0
  %314 = vmatprep.subr.mxu0 0.0
  %315 = vmatpush1.msra.mxu0 0.0
  %316 = vmatprep.subr.mxu0 0.0
  %317 = vmatpush1.msra.mxu0 0.0
  %318 = vmatprep.subr.mxu0 0.0
  %319 = vmatpush1.msra.mxu0 0.0
  %320 = vmatprep.subr.mxu0 0.0
  %321 = vmatpush1.msra.mxu0 0.0
  %322 = vmatprep.subr.mxu0 0.0
  %323 = vmatpush1.msra.mxu0 0.0
  %324 = vmatprep.subr.mxu0 0.0
  %325 = vmatpush1.msra.mxu0 0.0
  %326 = vmatprep.subr.mxu0 0.0
  %327 = vmatpush1.msra.mxu0 0.0
  %328 = vmatprep.subr.mxu0 0.0
  %329 = vmatpush1.msra.mxu0 0.0
  %330 = vmatprep.subr.mxu0 0.0
  %331 = vmatpush1.msra.mxu0 0.0
  %332 = vmatprep.subr.mxu0 0.0
  %333 = vmatpush1.msra.mxu0 0.0
  %334 = vmatprep.subr.mxu0 0.0
  %335 = vmatpush1.msra.mxu0 0.0
  %336 = vmatprep.subr.mxu0 0.0
  %337 = vmatpush1.msra.mxu0 0.0
  %338 = vmatprep.subr.mxu0 0.0
  %339 = vmatpush1.msra.mxu0 0.0
  %340 = vmatprep.subr.mxu0 0.0
  %341 = vmatpush1.msra.mxu0 0.0
  %342 = vmatprep.subr.mxu0 0.0
  %343 = vmatpush1.msra.mxu0 0.0
  %344 = vmatprep.mubr.f32.mxu0 0.0
  %345 = vmatmul.mubr.f32.gmra.mrb[0].mxu0 %v278
  %v346 = vpop.f32.mrb[0].mxu0
  %v347 = vadd.f32 0.0, %v346
  %v348 = vpop.f32.mrb[0].mxu0
  %349 = vdwg.mxu0
  %v350 = vadd.f32 %v133, %v347
  %v351 = vtanh.pop %v350
  %v352 = vmul.f32 %v351, 0.5
  %v353 = vadd.f32 %v352, 0.5
  %355 = vrot.lane.b32.xlu0 %v276, 24
  %v356 = vpop.permute.xlu0 %355
  %v358 = vmul.f32 %v353, %v356
  %360 = vrot.lane.b32.xlu0 %v351, 56
  %v361 = vpop.permute.xlu0 %360
  %v363 = vmul.f32 %v353, %v361
  %365 = vrot.lane.b32.xlu0 %v363, 24
  %v366 = vpop.permute.xlu0 %365
  %v368 = vadd.f32 %v358, %v366
  %v369 = vtanh.pop %v368
  %371 = vrot.lane.b32.xlu0 %v369, 24
  %v372 = vpop.permute.xlu0 %371
  %v374 = vmul.f32 %v353, %v372
  %vm375 = vcmp.lt.s32.totalorder %v170, 16
  %377 = vrot.lane.b32.xlu0 %v374, 80
  %v378 = vpop.permute.xlu0 %377
  %v380 = vsel %vm375, %v378, %v271
  %382 = vrot.lane.b32.xlu0 %v368, 104
  %v383 = vpop.permute.xlu0 %382
  %v385 = vsel %vm375, %v383, %v276
  %v387 = vsel %vm171, %v380, 0
  %389 = vmatprep.subr.mxu0 0.0
  %390 = vmatpush1.msra.mxu0 %v166
  %391 = vmatprep.subr.mxu0 0.0
  %392 = vmatpush1.msra.mxu0 %v167
  %393 = vmatprep.subr.mxu0 0.0
  %394 = vmatpush1.msra.mxu0 %v168
  %395 = vmatprep.subr.mxu0 0.0
  %396 = vmatpush1.msra.mxu0 0.0
  %397 = vmatprep.subr.mxu0 0.0
  %398 = vmatpush1.msra.mxu0 0.0
  %399 = vmatprep.subr.mxu0 0.0
  %400 = vmatpush1.msra.mxu0 0.0
  %401 = vmatprep.subr.mxu0 0.0
  %402 = vmatpush1.msra.mxu0 0.0
  %403 = vmatprep.subr.mxu0 0.0
  %404 = vmatpush1.msra.mxu0 0.0
  %405 = vmatprep.subr.mxu0 0.0
  %406 = vmatpush1.msra.mxu0 0.0
  %407 = vmatprep.subr.mxu0 0.0
  %408 = vmatpush1.msra.mxu0 0.0
  %409 = vmatprep.subr.mxu0 0.0
  %410 = vmatpush1.msra.mxu0 0.0
  %411 = vmatprep.subr.mxu0 0.0
  %412 = vmatpush1.msra.mxu0 0.0
  %413 = vmatprep.subr.mxu0 0.0
  %414 = vmatpush1.msra.mxu0 0.0
  %415 = vmatprep.subr.mxu0 0.0
  %416 = vmatpush1.msra.mxu0 0.0
  %417 = vmatprep.subr.mxu0 0.0
  %418 = vmatpush1.msra.mxu0 0.0
  %419 = vmatprep.subr.mxu0 0.0
  %420 = vmatpush1.msra.mxu0 0.0
  %421 = vmatprep.subr.mxu0 0.0
  %422 = vmatpush1.msra.mxu0 0.0
  %423 = vmatprep.subr.mxu0 0.0
  %424 = vmatpush1.msra.mxu0 0.0
  %425 = vmatprep.subr.mxu0 0.0
  %426 = vmatpush1.msra.mxu0 0.0
  %427 = vmatprep.subr.mxu0 0.0
  %428 = vmatpush1.msra.mxu0 0.0
  %429 = vmatprep.subr.mxu0 0.0
  %430 = vmatpush1.msra.mxu0 0.0
  %431 = vmatprep.subr.mxu0 0.0
  %432 = vmatpush1.msra.mxu0 0.0
  %433 = vmatprep.subr.mxu0 0.0
  %434 = vmatpush1.msra.mxu0 0.0
  %435 = vmatprep.subr.mxu0 0.0
  %436 = vmatpush1.msra.mxu0 0.0
  %437 = vmatprep.subr.mxu0 0.0
  %438 = vmatpush1.msra.mxu0 0.0
  %439 = vmatprep.subr.mxu0 0.0
  %440 = vmatpush1.msra.mxu0 0.0
  %441 = vmatprep.subr.mxu0 0.0
  %442 = vmatpush1.msra.mxu0 0.0
  %443 = vmatprep.subr.mxu0 0.0
  %444 = vmatpush1.msra.mxu0 0.0
  %445 = vmatprep.subr.mxu0 0.0
  %446 = vmatpush1.msra.mxu0 0.0
  %447 = vmatprep.subr.mxu0 0.0
  %448 = vmatpush1.msra.mxu0 0.0
  %449 = vmatprep.subr.mxu0 0.0
  %450 = vmatpush1.msra.mxu0 0.0
  %451 = vmatprep.subr.mxu0 0.0
  %452 = vmatpush1.msra.mxu0 0.0
  %453 = vmatprep.mubr.f32.mxu0 0.0
  %454 = vmatmul.mubr.f32.gmra.mrb[0].mxu0 %v387
  %v455 = vpop.f32.mrb[0].mxu0
  %v456 = vadd.f32 0.0, %v455
  %v457 = vpop.f32.mrb[0].mxu0
  %458 = vdwg.mxu0
  %v459 = vadd.f32 %v138, %v456
  %v460 = vtanh.pop %v459
  %v461 = vmul.f32 %v460, 0.5
  %v462 = vadd.f32 %v461, 0.5
  %464 = vrot.lane.b32.xlu0 %v385, 24
  %v465 = vpop.permute.xlu0 %464
  %v467 = vmul.f32 %v462, %v465
  %469 = vrot.lane.b32.xlu0 %v460, 56
  %v470 = vpop.permute.xlu0 %469
  %v472 = vmul.f32 %v462, %v470
  %474 = vrot.lane.b32.xlu0 %v472, 24
  %v475 = vpop.permute.xlu0 %474
  %v477 = vadd.f32 %v467, %v475
  %v478 = vtanh.pop %v477
  %480 = vrot.lane.b32.xlu0 %v478, 24
  %v481 = vpop.permute.xlu0 %480
  %v483 = vmul.f32 %v462, %v481
  %485 = vrot.lane.b32.xlu0 %v483, 80
  %v486 = vpop.permute.xlu0 %485
  %v487 = vsel %vm171, %v486, 0
  %489 = vmatprep.subr.mxu0 0.0
  %490 = vmatpush1.msra.mxu0 %v166
  %491 = vmatprep.subr.mxu0 0.0
  %492 = vmatpush1.msra.mxu0 %v167
  %493 = vmatprep.subr.mxu0 0.0
  %494 = vmatpush1.msra.mxu0 %v168
  %495 = vmatprep.subr.mxu0 0.0
  %496 = vmatpush1.msra.mxu0 0.0
  %497 = vmatprep.subr.mxu0 0.0
  %498 = vmatpush1.msra.mxu0 0.0
  %499 = vmatprep.subr.mxu0 0.0
  %500 = vmatpush1.msra.mxu0 0.0
  %501 = vmatprep.subr.mxu0 0.0
  %502 = vmatpush1.msra.mxu0 0.0
  %503 = vmatprep.subr.mxu0 0.0
  %504 = vmatpush1.msra.mxu0 0.0
  %505 = vmatprep.subr.mxu0 0.0
  %506 = vmatpush1.msra.mxu0 0.0
  %507 = vmatprep.subr.mxu0 0.0
  %508 = vmatpush1.msra.mxu0 0.0
  %509 = vmatprep.subr.mxu0 0.0
  %510 = vmatpush1.msra.mxu0 0.0
  %511 = vmatprep.subr.mxu0 0.0
  %512 = vmatpush1.msra.mxu0 0.0
  %513 = vmatprep.subr.mxu0 0.0
  %514 = vmatpush1.msra.mxu0 0.0
  %515 = vmatprep.subr.mxu0 0.0
  %516 = vmatpush1.msra.mxu0 0.0
  %517 = vmatprep.subr.mxu0 0.0
  %518 = vmatpush1.msra.mxu0 0.0
  %519 = vmatprep.subr.mxu0 0.0
  %520 = vmatpush1.msra.mxu0 0.0
  %521 = vmatprep.subr.mxu0 0.0
  %522 = vmatpush1.msra.mxu0 0.0
  %523 = vmatprep.subr.mxu0 0.0
  %524 = vmatpush1.msra.mxu0 0.0
  %525 = vmatprep.subr.mxu0 0.0
  %526 = vmatpush1.msra.mxu0 0.0
  %527 = vmatprep.subr.mxu0 0.0
  %528 = vmatpush1.msra.mxu0 0.0
  %529 = vmatprep.subr.mxu0 0.0
  %530 = vmatpush1.msra.mxu0 0.0
  %531 = vmatprep.subr.mxu0 0.0
  %532 = vmatpush1.msra.mxu0 0.0
  %533 = vmatprep.subr.mxu0 0.0
  %534 = vmatpush1.msra.mxu0 0.0
  %535 = vmatprep.subr.mxu0 0.0
  %536 = vmatpush1.msra.mxu0 0.0
  %537 = vmatprep.subr.mxu0 0.0
  %538 = vmatpush1.msra.mxu0 0.0
  %539 = vmatprep.subr.mxu0 0.0
  %540 = vmatpush1.msra.mxu0 0.0
  %541 = vmatprep.subr.mxu0 0.0
  %542 = vmatpush1.msra.mxu0 0.0
  %543 = vmatprep.subr.mxu0 0.0
  %544 = vmatpush1.msra.mxu0 0.0
  %545 = vmatprep.subr.mxu0 0.0
  %546 = vmatpush1.msra.mxu0 0.0
  %547 = vmatprep.subr.mxu0 0.0
  %548 = vmatpush1.msra.mxu0 0.0
  %549 = vmatprep.subr.mxu0 0.0
  %550 = vmatpush1.msra.mxu0 0.0
  %551 = vmatprep.subr.mxu0 0.0
  %552 = vmatpush1.msra.mxu0 0.0
  %553 = vmatprep.mubr.f32.mxu0 0.0
  %554 = vmatmul.mubr.f32.gmra.mrb[0].mxu0 %v487
  %v555 = vpop.f32.mrb[0].mxu0
  %v556 = vadd.f32 0.0, %v555
  %v557 = vpop.f32.mrb[0].mxu0
  %558 = vdwg.mxu0
  %v559 = vadd.f32 %v143, %v556
  %v560 = vtanh.pop %v559
  %v561 = vmul.f32 %v560, 0.5
  %v562 = vadd.f32 %v561, 0.5
  %v563 = vmul.f32 %v562, %v477
  %565 = vrot.lane.b32.xlu0 %v560, 56
  %v566 = vpop.permute.xlu0 %565
  %v568 = vmul.f32 %v562, %v566
  %570 = vrot.lane.b32.xlu0 %v568, 24
  %v571 = vpop.permute.xlu0 %570
  %v573 = vadd.f32 %v563, %v571
  %v574 = vtanh.pop %v573
  %576 = vrot.lane.b32.xlu0 %v574, 24
  %v577 = vpop.permute.xlu0 %576
  %v579 = vmul.f32 %v562, %v577
  %581 = vrot.lane.b32.xlu0 %v579, 80
  %v582 = vpop.permute.xlu0 %581
  %v583 = vsel %vm171, %v582, 0
  %585 = vmatprep.subr.mxu0 0.0
  %586 = vmatpush1.msra.mxu0 %v166
  %587 = vmatprep.subr.mxu0 0.0
  %588 = vmatpush1.msra.mxu0 %v167
  %589 = vmatprep.subr.mxu0 0.0
  %590 = vmatpush1.msra.mxu0 %v168
  %591 = vmatprep.subr.mxu0 0.0
  %592 = vmatpush1.msra.mxu0 0.0
  %593 = vmatprep.subr.mxu0 0.0
  %594 = vmatpush1.msra.mxu0 0.0
  %595 = vmatprep.subr.mxu0 0.0
  %596 = vmatpush1.msra.mxu0 0.0
  %597 = vmatprep.subr.mxu0 0.0
  %598 = vmatpush1.msra.mxu0 0.0
  %599 = vmatprep.subr.mxu0 0.0
  %600 = vmatpush1.msra.mxu0 0.0
  %601 = vmatprep.subr.mxu0 0.0
  %602 = vmatpush1.msra.mxu0 0.0
  %603 = vmatprep.subr.mxu0 0.0
  %604 = vmatpush1.msra.mxu0 0.0
  %605 = vmatprep.subr.mxu0 0.0
  %606 = vmatpush1.msra.mxu0 0.0
  %607 = vmatprep.subr.mxu0 0.0
  %608 = vmatpush1.msra.mxu0 0.0
  %609 = vmatprep.subr.mxu0 0.0
  %610 = vmatpush1.msra.mxu0 0.0
  %611 = vmatprep.subr.mxu0 0.0
  %612 = vmatpush1.msra.mxu0 0.0
  %613 = vmatprep.subr.mxu0 0.0
  %614 = vmatpush1.msra.mxu0 0.0
  %615 = vmatprep.subr.mxu0 0.0
  %616 = vmatpush1.msra.mxu0 0.0
  %617 = vmatprep.subr.mxu0 0.0
  %618 = vmatpush1.msra.mxu0 0.0
  %619 = vmatprep.subr.mxu0 0.0
  %620 = vmatpush1.msra.mxu0 0.0
  %621 = vmatprep.subr.mxu0 0.0
  %622 = vmatpush1.msra.mxu0 0.0
  %623 = vmatprep.subr.mxu0 0.0
  %624 = vmatpush1.msra.mxu0 0.0
  %625 = vmatprep.subr.mxu0 0.0
  %626 = vmatpush1.msra.mxu0 0.0
  %627 = vmatprep.subr.mxu0 0.0
  %628 = vmatpush1.msra.mxu0 0.0
  %629 = vmatprep.subr.mxu0 0.0
  %630 = vmatpush1.msra.mxu0 0.0
  %631 = vmatprep.subr.mxu0 0.0
  %632 = vmatpush1.msra.mxu0 0.0
  %633 = vmatprep.subr.mxu0 0.0
  %634 = vmatpush1.msra.mxu0 0.0
  %635 = vmatprep.subr.mxu0 0.0
  %636 = vmatpush1.msra.mxu0 0.0
  %637 = vmatprep.subr.mxu0 0.0
  %638 = vmatpush1.msra.mxu0 0.0
  %639 = vmatprep.subr.mxu0 0.0
  %640 = vmatpush1.msra.mxu0 0.0
  %641 = vmatprep.subr.mxu0 0.0
  %642 = vmatpush1.msra.mxu0 0.0
  %643 = vmatprep.subr.mxu0 0.0
  %644 = vmatpush1.msra.mxu0 0.0
  %645 = vmatprep.subr.mxu0 0.0
  %646 = vmatpush1.msra.mxu0 0.0
  %647 = vmatprep.subr.mxu0 0.0
  %648 = vmatpush1.msra.mxu0 0.0
  %649 = vmatprep.mubr.f32.mxu0 0.0
  %650 = vmatmul.mubr.f32.gmra.mrb[0].mxu0 %v583
  %v651 = vpop.f32.mrb[0].mxu0
  %v652 = vadd.f32 0.0, %v651
  %v653 = vpop.f32.mrb[0].mxu0
  %654 = vdwg.mxu0
  %v655 = vadd.f32 %v148, %v652
  %v656 = vtanh.pop %v655
  %v657 = vmul.f32 %v656, 0.5
  %v658 = vadd.f32 %v657, 0.5
  %v659 = vmul.f32 %v658, %v573
  %661 = vrot.lane.b32.xlu0 %v656, 56
  %v662 = vpop.permute.xlu0 %661
  %v664 = vmul.f32 %v658, %v662
  %666 = vrot.lane.b32.xlu0 %v664, 24
  %v667 = vpop.permute.xlu0 %666
  %v669 = vadd.f32 %v659, %v667
  %v670 = vtanh.pop %v669
  %672 = vrot.lane.b32.xlu0 %v670, 24
  %v673 = vpop.permute.xlu0 %672
  %v675 = vmul.f32 %v658, %v673
  %677 = vrot.lane.b32.xlu0 %v675, 80
  %v678 = vpop.permute.xlu0 %677
  %v679 = vsel %vm171, %v678, 0
  %681 = vmatprep.subr.mxu0 0.0
  %682 = vmatpush1.msra.mxu0 %v166
  %683 = vmatprep.subr.mxu0 0.0
  %684 = vmatpush1.msra.mxu0 %v167
  %685 = vmatprep.subr.mxu0 0.0
  %686 = vmatpush1.msra.mxu0 %v168
  %687 = vmatprep.subr.mxu0 0.0
  %688 = vmatpush1.msra.mxu0 0.0
  %689 = vmatprep.subr.mxu0 0.0
  %690 = vmatpush1.msra.mxu0 0.0
  %691 = vmatprep.subr.mxu0 0.0
  %692 = vmatpush1.msra.mxu0 0.0
  %693 = vmatprep.subr.mxu0 0.0
  %694 = vmatpush1.msra.mxu0 0.0
  %695 = vmatprep.subr.mxu0 0.0
  %696 = vmatpush1.msra.mxu0 0.0
  %697 = vmatprep.subr.mxu0 0.0
  %698 = vmatpush1.msra.mxu0 0.0
  %699 = vmatprep.subr.mxu0 0.0
  %700 = vmatpush1.msra.mxu0 0.0
  %701 = vmatprep.subr.mxu0 0.0
  %702 = vmatpush1.msra.mxu0 0.0
  %703 = vmatprep.subr.mxu0 0.0
  %704 = vmatpush1.msra.mxu0 0.0
  %705 = vmatprep.subr.mxu0 0.0
  %706 = vmatpush1.msra.mxu0 0.0
  %707 = vmatprep.subr.mxu0 0.0
  %708 = vmatpush1.msra.mxu0 0.0
  %709 = vmatprep.subr.mxu0 0.0
  %710 = vmatpush1.msra.mxu0 0.0
  %711 = vmatprep.subr.mxu0 0.0
  %712 = vmatpush1.msra.mxu0 0.0
  %713 = vmatprep.subr.mxu0 0.0
  %714 = vmatpush1.msra.mxu0 0.0
  %715 = vmatprep.subr.mxu0 0.0
  %716 = vmatpush1.msra.mxu0 0.0
  %717 = vmatprep.subr.mxu0 0.0
  %718 = vmatpush1.msra.mxu0 0.0
  %719 = vmatprep.subr.mxu0 0.0
  %720 = vmatpush1.msra.mxu0 0.0
  %721 = vmatprep.subr.mxu0 0.0
  %722 = vmatpush1.msra.mxu0 0.0
  %723 = vmatprep.subr.mxu0 0.0
  %724 = vmatpush1.msra.mxu0 0.0
  %725 = vmatprep.subr.mxu0 0.0
  %726 = vmatpush1.msra.mxu0 0.0
  %727 = vmatprep.subr.mxu0 0.0
  %728 = vmatpush1.msra.mxu0 0.0
  %729 = vmatprep.subr.mxu0 0.0
  %730 = vmatpush1.msra.mxu0 0.0
  %731 = vmatprep.subr.mxu0 0.0
  %732 = vmatpush1.msra.mxu0 0.0
  %733 = vmatprep.subr.mxu0 0.0
  %734 = vmatpush1.msra.mxu0 0.0
  %735 = vmatprep.subr.mxu0 0.0
  %736 = vmatpush1.msra.mxu0 0.0
  %737 = vmatprep.subr.mxu0 0.0
  %738 = vmatpush1.msra.mxu0 0.0
  %739 = vmatprep.subr.mxu0 0.0
  %740 = vmatpush1.msra.mxu0 0.0
  %741 = vmatprep.subr.mxu0 0.0
  %742 = vmatpush1.msra.mxu0 0.0
  %743 = vmatprep.subr.mxu0 0.0
  %744 = vmatpush1.msra.mxu0 0.0
  %745 = vmatprep.mubr.f32.mxu0 0.0
  %746 = vmatmul.mubr.f32.gmra.mrb[0].mxu0 %v679
  %v747 = vpop.f32.mrb[0].mxu0
  %v748 = vadd.f32 0.0, %v747
  %v749 = vpop.f32.mrb[0].mxu0
  %750 = vdwg.mxu0
  %v751 = vadd.f32 %v153, %v748
  %v752 = vtanh.pop %v751
  %v753 = vmul.f32 %v752, 0.5
  %v754 = vadd.f32 %v753, 0.5
  %v755 = vmul.f32 %v754, %v669
  %757 = vrot.lane.b32.xlu0 %v752, 56
  %v758 = vpop.permute.xlu0 %757
  %v760 = vmul.f32 %v754, %v758
  %762 = vrot.lane.b32.xlu0 %v760, 24
  %v763 = vpop.permute.xlu0 %762
  %v765 = vadd.f32 %v755, %v763
  %v766 = vtanh.pop %v765
  %768 = vrot.lane.b32.xlu0 %v766, 24
  %v769 = vpop.permute.xlu0 %768
  %v771 = vmul.f32 %v754, %v769
  %773 = vrot.lane.b32.xlu0 %v771, 80
  %v774 = vpop.permute.xlu0 %773
  %v775 = vsel %vm171, %v774, 0
  %777 = vmatprep.subr.mxu0 0.0
  %778 = vmatpush1.msra.mxu0 %v166
  %779 = vmatprep.subr.mxu0 0.0
  %780 = vmatpush1.msra.mxu0 %v167
  %781 = vmatprep.subr.mxu0 0.0
  %782 = vmatpush1.msra.mxu0 %v168
  %783 = vmatprep.subr.mxu0 0.0
  %784 = vmatpush1.msra.mxu0 0.0
  %785 = vmatprep.subr.mxu0 0.0
  %786 = vmatpush1.msra.mxu0 0.0
  %787 = vmatprep.subr.mxu0 0.0
  %788 = vmatpush1.msra.mxu0 0.0
  %789 = vmatprep.subr.mxu0 0.0
  %790 = vmatpush1.msra.mxu0 0.0
  %791 = vmatprep.subr.mxu0 0.0
  %792 = vmatpush1.msra.mxu0 0.0
  %793 = vmatprep.subr.mxu0 0.0
  %794 = vmatpush1.msra.mxu0 0.0
  %795 = vmatprep.subr.mxu0 0.0
  %796 = vmatpush1.msra.mxu0 0.0
  %797 = vmatprep.subr.mxu0 0.0
  %798 = vmatpush1.msra.mxu0 0.0
  %799 = vmatprep.subr.mxu0 0.0
  %800 = vmatpush1.msra.mxu0 0.0
  %801 = vmatprep.subr.mxu0 0.0
  %802 = vmatpush1.msra.mxu0 0.0
  %803 = vmatprep.subr.mxu0 0.0
  %804 = vmatpush1.msra.mxu0 0.0
  %805 = vmatprep.subr.mxu0 0.0
  %806 = vmatpush1.msra.mxu0 0.0
  %807 = vmatprep.subr.mxu0 0.0
  %808 = vmatpush1.msra.mxu0 0.0
  %809 = vmatprep.subr.mxu0 0.0
  %810 = vmatpush1.msra.mxu0 0.0
  %811 = vmatprep.subr.mxu0 0.0
  %812 = vmatpush1.msra.mxu0 0.0
  %813 = vmatprep.subr.mxu0 0.0
  %814 = vmatpush1.msra.mxu0 0.0
  %815 = vmatprep.subr.mxu0 0.0
  %816 = vmatpush1.msra.mxu0 0.0
  %817 = vmatprep.subr.mxu0 0.0
  %818 = vmatpush1.msra.mxu0 0.0
  %819 = vmatprep.subr.mxu0 0.0
  %820 = vmatpush1.msra.mxu0 0.0
  %821 = vmatprep.subr.mxu0 0.0
  %822 = vmatpush1.msra.mxu0 0.0
  %823 = vmatprep.subr.mxu0 0.0
  %824 = vmatpush1.msra.mxu0 0.0
  %825 = vmatprep.subr.mxu0 0.0
  %826 = vmatpush1.msra.mxu0 0.0
  %827 = vmatprep.subr.mxu0 0.0
  %828 = vmatpush1.msra.mxu0 0.0
  %829 = vmatprep.subr.mxu0 0.0
  %830 = vmatpush1.msra.mxu0 0.0
  %831 = vmatprep.subr.mxu0 0.0
  %832 = vmatpush1.msra.mxu0 0.0
  %833 = vmatprep.subr.mxu0 0.0
  %834 = vmatpush1.msra.mxu0 0.0
  %835 = vmatprep.subr.mxu0 0.0
  %836 = vmatpush1.msra.mxu0 0.0
  %837 = vmatprep.subr.mxu0 0.0
  %838 = vmatpush1.msra.mxu0 0.0
  %839 = vmatprep.subr.mxu0 0.0
  %840 = vmatpush1.msra.mxu0 0.0
  %841 = vmatprep.mubr.f32.mxu0 0.0
  %842 = vmatmul.mubr.f32.gmra.mrb[0].mxu0 %v775
  %v843 = vpop.f32.mrb[0].mxu0
  %v844 = vadd.f32 0.0, %v843
  %v845 = vpop.f32.mrb[0].mxu0
  %846 = vdwg.mxu0
  %v847 = vadd.f32 %v158, %v844
  %v848 = vtanh.pop %v847
  %v849 = vmul.f32 %v848, 0.5
  %v850 = vadd.f32 %v849, 0.5
  %v851 = vmul.f32 %v850, %v765
  %853 = vrot.lane.b32.xlu0 %v848, 56
  %v854 = vpop.permute.xlu0 %853
  %v856 = vmul.f32 %v850, %v854
  %858 = vrot.lane.b32.xlu0 %v856, 24
  %v859 = vpop.permute.xlu0 %858
  %v861 = vadd.f32 %v851, %v859
  %v862 = vtanh.pop %v861
  %864 = vrot.lane.b32.xlu0 %v862, 24
  %v865 = vpop.permute.xlu0 %864
  %v867 = vmul.f32 %v850, %v865
  %869 = vrot.lane.b32.xlu0 %v867, 80
  %v870 = vpop.permute.xlu0 %869
  %v871 = vsel %vm171, %v870, 0
  %873 = vmatprep.subr.mxu0 0.0
  %874 = vmatpush1.msra.mxu0 %v166
  %875 = vmatprep.subr.mxu0 0.0
  %876 = vmatpush1.msra.mxu0 %v167
  %877 = vmatprep.subr.mxu0 0.0
  %878 = vmatpush1.msra.mxu0 %v168
  %879 = vmatprep.subr.mxu0 0.0
  %880 = vmatpush1.msra.mxu0 0.0
  %881 = vmatprep.subr.mxu0 0.0
  %882 = vmatpush1.msra.mxu0 0.0
  %883 = vmatprep.subr.mxu0 0.0
  %884 = vmatpush1.msra.mxu0 0.0
  %885 = vmatprep.subr.mxu0 0.0
  %886 = vmatpush1.msra.mxu0 0.0
  %887 = vmatprep.subr.mxu0 0.0
  %888 = vmatpush1.msra.mxu0 0.0
  %889 = vmatprep.subr.mxu0 0.0
  %890 = vmatpush1.msra.mxu0 0.0
  %891 = vmatprep.subr.mxu0 0.0
  %892 = vmatpush1.msra.mxu0 0.0
  %893 = vmatprep.subr.mxu0 0.0
  %894 = vmatpush1.msra.mxu0 0.0
  %895 = vmatprep.subr.mxu0 0.0
  %896 = vmatpush1.msra.mxu0 0.0
  %897 = vmatprep.subr.mxu0 0.0
  %898 = vmatpush1.msra.mxu0 0.0
  %899 = vmatprep.subr.mxu0 0.0
  %900 = vmatpush1.msra.mxu0 0.0
  %901 = vmatprep.subr.mxu0 0.0
  %902 = vmatpush1.msra.mxu0 0.0
  %903 = vmatprep.subr.mxu0 0.0
  %904 = vmatpush1.msra.mxu0 0.0
  %905 = vmatprep.subr.mxu0 0.0
  %906 = vmatpush1.msra.mxu0 0.0
  %907 = vmatprep.subr.mxu0 0.0
  %908 = vmatpush1.msra.mxu0 0.0
  %909 = vmatprep.subr.mxu0 0.0
  %910 = vmatpush1.msra.mxu0 0.0
  %911 = vmatprep.subr.mxu0 0.0
  %912 = vmatpush1.msra.mxu0 0.0
  %913 = vmatprep.subr.mxu0 0.0
  %914 = vmatpush1.msra.mxu0 0.0
  %915 = vmatprep.subr.mxu0 0.0
  %916 = vmatpush1.msra.mxu0 0.0
  %917 = vmatprep.subr.mxu0 0.0
  %918 = vmatpush1.msra.mxu0 0.0
  %919 = vmatprep.subr.mxu0 0.0
  %920 = vmatpush1.msra.mxu0 0.0
  %921 = vmatprep.subr.mxu0 0.0
  %922 = vmatpush1.msra.mxu0 0.0
  %923 = vmatprep.subr.mxu0 0.0
  %924 = vmatpush1.msra.mxu0 0.0
  %925 = vmatprep.subr.mxu0 0.0
  %926 = vmatpush1.msra.mxu0 0.0
  %927 = vmatprep.subr.mxu0 0.0
  %928 = vmatpush1.msra.mxu0 0.0
  %929 = vmatprep.subr.mxu0 0.0
  %930 = vmatpush1.msra.mxu0 0.0
  %931 = vmatprep.subr.mxu0 0.0
  %932 = vmatpush1.msra.mxu0 0.0
  %933 = vmatprep.subr.mxu0 0.0
  %934 = vmatpush1.msra.mxu0 0.0
  %935 = vmatprep.subr.mxu0 0.0
  %936 = vmatpush1.msra.mxu0 0.0
  %937 = vmatprep.mubr.f32.mxu0 0.0
  %938 = vmatmul.mubr.f32.gmra.mrb[0].mxu0 %v871
  %v939 = vpop.f32.mrb[0].mxu0
  %v940 = vadd.f32 0.0, %v939
  %v941 = vpop.f32.mrb[0].mxu0
  %942 = vdwg.mxu0
  %v943 = vadd.f32 %v163, %v940
  %v944 = vtanh.pop %v943
  %v945 = vmul.f32 %v944, 0.5
  %v946 = vadd.f32 %v945, 0.5
  %v947 = vmul.f32 %v946, %v861
  %949 = vrot.lane.b32.xlu0 %v944, 56
  %v950 = vpop.permute.xlu0 %949
  %v952 = vmul.f32 %v946, %v950
  %954 = vrot.lane.b32.xlu0 %v952, 24
  %v955 = vpop.permute.xlu0 %954
  %v957 = vadd.f32 %v947, %v955
  %v958 = vtanh.pop %v957
  %960 = vrot.lane.b32.xlu0 %v958, 24
  %v961 = vpop.permute.xlu0 %960
  %v963 = vmul.f32 %v946, %v961
  %965 = vrot.lane.b32.xlu0 %v963, 80
  %v966 = vpop.permute.xlu0 %965
  %v967 = vsel %vm171, %v966, 0
  %969 = vmatprep.subr.mxu0 0.0
  %970 = vmatpush1.msra.mxu0 %v166
  %971 = vmatprep.subr.mxu0 0.0
  %972 = vmatpush1.msra.mxu0 %v167
  %973 = vmatprep.subr.mxu0 0.0
  %974 = vmatpush1.msra.mxu0 %v168
  %975 = vmatprep.subr.mxu0 0.0
  %976 = vmatpush1.msra.mxu0 0.0
  %977 = vmatprep.subr.mxu0 0.0
  %978 = vmatpush1.msra.mxu0 0.0
  %979 = vmatprep.subr.mxu0 0.0
  %980 = vmatpush1.msra.mxu0 0.0
  %981 = vmatprep.subr.mxu0 0.0
  %982 = vmatpush1.msra.mxu0 0.0
  %983 = vmatprep.subr.mxu0 0.0
  %984 = vmatpush1.msra.mxu0 0.0
  %985 = vmatprep.subr.mxu0 0.0
  %986 = vmatpush1.msra.mxu0 0.0
  %987 = vmatprep.subr.mxu0 0.0
  %988 = vmatpush1.msra.mxu0 0.0
  %989 = vmatprep.subr.mxu0 0.0
  %990 = vmatpush1.msra.mxu0 0.0
  %991 = vmatprep.subr.mxu0 0.0
  %992 = vmatpush1.msra.mxu0 0.0
  %993 = vmatprep.subr.mxu0 0.0
  %994 = vmatpush1.msra.mxu0 0.0
  %995 = vmatprep.subr.mxu0 0.0
  %996 = vmatpush1.msra.mxu0 0.0
  %997 = vmatprep.subr.mxu0 0.0
  %998 = vmatpush1.msra.mxu0 0.0
  %999 = vmatprep.subr.mxu0 0.0
  %1000 = vmatpush1.msra.mxu0 0.0
  %1001 = vmatprep.subr.mxu0 0.0
  %1002 = vmatpush1.msra.mxu0 0.0
  %1003 = vmatprep.subr.mxu0 0.0
  %1004 = vmatpush1.msra.mxu0 0.0
  %1005 = vmatprep.subr.mxu0 0.0
  %1006 = vmatpush1.msra.mxu0 0.0
  %1007 = vmatprep.subr.mxu0 0.0
  %1008 = vmatpush1.msra.mxu0 0.0
  %1009 = vmatprep.subr.mxu0 0.0
  %1010 = vmatpush1.msra.mxu0 0.0
  %1011 = vmatprep.subr.mxu0 0.0
  %1012 = vmatpush1.msra.mxu0 0.0
  %1013 = vmatprep.subr.mxu0 0.0
  %1014 = vmatpush1.msra.mxu0 0.0
  %1015 = vmatprep.subr.mxu0 0.0
  %1016 = vmatpush1.msra.mxu0 0.0
  %1017 = vmatprep.subr.mxu0 0.0
  %1018 = vmatpush1.msra.mxu0 0.0
  %1019 = vmatprep.subr.mxu0 0.0
  %1020 = vmatpush1.msra.mxu0 0.0
  %1021 = vmatprep.subr.mxu0 0.0
  %1022 = vmatpush1.msra.mxu0 0.0
  %1023 = vmatprep.subr.mxu0 0.0
  %1024 = vmatpush1.msra.mxu0 0.0
  %1025 = vmatprep.subr.mxu0 0.0
  %1026 = vmatpush1.msra.mxu0 0.0
  %1027 = vmatprep.subr.mxu0 0.0
  %1028 = vmatpush1.msra.mxu0 0.0
  %1029 = vmatprep.subr.mxu0 0.0
  %1030 = vmatpush1.msra.mxu0 0.0
  %1031 = vmatprep.subr.mxu0 0.0
  %1032 = vmatpush1.msra.mxu0 0.0
  %1033 = vmatprep.mubr.f32.mxu0 0.0
  %1034 = vmatmul.mubr.f32.gmra.mrb[0].mxu0 %v967
  %v1035 = vpop.f32.mrb[0].mxu0
  %v1036 = vadd.f32 0.0, %v1035
  %v1037 = vpop.f32.mrb[0].mxu0
  %1038 = vdwg.mxu0
  %v1039 = vadd.f32 %v148, %v1036
  %v1040 = vtanh.pop %v1039
  %v1041 = vmul.f32 %v1040, 0.5
  %v1042 = vadd.f32 %v1041, 0.5
  %v1043 = vmul.f32 %v1042, %v957
  %1045 = vrot.lane.b32.xlu0 %v1040, 56
  %v1046 = vpop.permute.xlu0 %1045
  %v1048 = vmul.f32 %v1042, %v1046
  %1050 = vrot.lane.b32.xlu0 %v1048, 24
  %v1051 = vpop.permute.xlu0 %1050
  %v1053 = vadd.f32 %v1043, %v1051
  %v1054 = vtanh.pop %v1053
  %1056 = vrot.lane.b32.xlu0 %v1054, 24
  %v1057 = vpop.permute.xlu0 %1056
  %v1059 = vmul.f32 %v1042, %v1057
  %1061 = vrot.lane.b32.xlu0 %v1059, 80
  %v1062 = vpop.permute.xlu0 %1061
  %v1063 = vsel %vm171, %v1062, 0
  %1065 = vmatprep.subr.mxu0 0.0
  %1066 = vmatpush1.msra.mxu0 %v166
  %1067 = vmatprep.subr.mxu0 0.0
  %1068 = vmatpush1.msra.mxu0 %v167
  %1069 = vmatprep.subr.mxu0 0.0
  %1070 = vmatpush1.msra.mxu0 %v168
  %1071 = vmatprep.subr.mxu0 0.0
  %1072 = vmatpush1.msra.mxu0 0.0
  %1073 = vmatprep.subr.mxu0 0.0
  %1074 = vmatpush1.msra.mxu0 0.0
  %1075 = vmatprep.subr.mxu0 0.0
  %1076 = vmatpush1.msra.mxu0 0.0
  %1077 = vmatprep.subr.mxu0 0.0
  %1078 = vmatpush1.msra.mxu0 0.0
  %1079 = vmatprep.subr.mxu0 0.0
  %1080 = vmatpush1.msra.mxu0 0.0
  %1081 = vmatprep.subr.mxu0 0.0
  %1082 = vmatpush1.msra.mxu0 0.0
  %1083 = vmatprep.subr.mxu0 0.0
  %1084 = vmatpush1.msra.mxu0 0.0
  %1085 = vmatprep.subr.mxu0 0.0
  %1086 = vmatpush1.msra.mxu0 0.0
  %1087 = vmatprep.subr.mxu0 0.0
  %1088 = vmatpush1.msra.mxu0 0.0
  %1089 = vmatprep.subr.mxu0 0.0
  %1090 = vmatpush1.msra.mxu0 0.0
  %1091 = vmatprep.subr.mxu0 0.0
  %1092 = vmatpush1.msra.mxu0 0.0
  %1093 = vmatprep.subr.mxu0 0.0
  %1094 = vmatpush1.msra.mxu0 0.0
  %1095 = vmatprep.subr.mxu0 0.0
  %1096 = vmatpush1.msra.mxu0 0.0
  %1097 = vmatprep.subr.mxu0 0.0
  %1098 = vmatpush1.msra.mxu0 0.0
  %1099 = vmatprep.subr.mxu0 0.0
  %1100 = vmatpush1.msra.mxu0 0.0
  %1101 = vmatprep.subr.mxu0 0.0
  %1102 = vmatpush1.msra.mxu0 0.0
  %1103 = vmatprep.subr.mxu0 0.0
  %1104 = vmatpush1.msra.mxu0 0.0
  %1105 = vmatprep.subr.mxu0 0.0
  %1106 = vmatpush1.msra.mxu0 0.0
  %1107 = vmatprep.subr.mxu0 0.0
  %1108 = vmatpush1.msra.mxu0 0.0
  %1109 = vmatprep.subr.mxu0 0.0
  %1110 = vmatpush1.msra.mxu0 0.0
  %1111 = vmatprep.subr.mxu0 0.0
  %1112 = vmatpush1.msra.mxu0 0.0
  %1113 = vmatprep.subr.mxu0 0.0
  %1114 = vmatpush1.msra.mxu0 0.0
  %1115 = vmatprep.subr.mxu0 0.0
  %1116 = vmatpush1.msra.mxu0 0.0
  %1117 = vmatprep.subr.mxu0 0.0
  %1118 = vmatpush1.msra.mxu0 0.0
  %1119 = vmatprep.subr.mxu0 0.0
  %1120 = vmatpush1.msra.mxu0 0.0
  %1121 = vmatprep.subr.mxu0 0.0
  %1122 = vmatpush1.msra.mxu0 0.0
  %1123 = vmatprep.subr.mxu0 0.0
  %1124 = vmatpush1.msra.mxu0 0.0
  %1125 = vmatprep.subr.mxu0 0.0
  %1126 = vmatpush1.msra.mxu0 0.0
  %1127 = vmatprep.subr.mxu0 0.0
  %1128 = vmatpush1.msra.mxu0 0.0
  %1129 = vmatprep.mubr.f32.mxu0 0.0
  %1130 = vmatmul.mubr.f32.gmra.mrb[0].mxu0 %v1063
  %v1131 = vpop.f32.mrb[0].mxu0
  %v1132 = vadd.f32 0.0, %v1131
  %v1133 = vpop.f32.mrb[0].mxu0
  %1134 = vdwg.mxu0
  %v1135 = vadd.f32 %v148, %v1132
  %v1136 = vtanh.pop %v1135
  %v1137 = vmul.f32 %v1136, 0.5
  %v1138 = vadd.f32 %v1137, 0.5
  %v1139 = vmul.f32 %v1138, %v1053
  %1141 = vrot.lane.b32.xlu0 %v1136, 56
  %v1142 = vpop.permute.xlu0 %1141
  %v1144 = vmul.f32 %v1138, %v1142
  %1146 = vrot.lane.b32.xlu0 %v1144, 24
  %v1147 = vpop.permute.xlu0 %1146
  %v1149 = vadd.f32 %v1139, %v1147
  %v1150 = vtanh.pop %v1149
  %1152 = vrot.lane.b32.xlu0 %v1150, 24
  %v1153 = vpop.permute.xlu0 %1152
  %v1155 = vmul.f32 %v1138, %v1153
  %1157 = vrot.lane.b32.xlu0 %v1155, 80
  %v1158 = vpop.permute.xlu0 %1157
  %v1159 = vsel %vm171, %v1158, 0
  %1161 = vmatprep.subr.mxu0 0.0
  %1162 = vmatpush1.msra.mxu0 %v166
  %1163 = vmatprep.subr.mxu0 0.0
  %1164 = vmatpush1.msra.mxu0 %v167
  %1165 = vmatprep.subr.mxu0 0.0
  %1166 = vmatpush1.msra.mxu0 %v168
  %1167 = vmatprep.subr.mxu0 0.0
  %1168 = vmatpush1.msra.mxu0 0.0
  %1169 = vmatprep.subr.mxu0 0.0
  %1170 = vmatpush1.msra.mxu0 0.0
  %1171 = vmatprep.subr.mxu0 0.0
  %1172 = vmatpush1.msra.mxu0 0.0
  %1173 = vmatprep.subr.mxu0 0.0
  %1174 = vmatpush1.msra.mxu0 0.0
  %1175 = vmatprep.subr.mxu0 0.0
  %1176 = vmatpush1.msra.mxu0 0.0
  %1177 = vmatprep.subr.mxu0 0.0
  %1178 = vmatpush1.msra.mxu0 0.0
  %1179 = vmatprep.subr.mxu0 0.0
  %1180 = vmatpush1.msra.mxu0 0.0
  %1181 = vmatprep.subr.mxu0 0.0
  %1182 = vmatpush1.msra.mxu0 0.0
  %1183 = vmatprep.subr.mxu0 0.0
  %1184 = vmatpush1.msra.mxu0 0.0
  %1185 = vmatprep.subr.mxu0 0.0
  %1186 = vmatpush1.msra.mxu0 0.0
  %1187 = vmatprep.subr.mxu0 0.0
  %1188 = vmatpush1.msra.mxu0 0.0
  %1189 = vmatprep.subr.mxu0 0.0
  %1190 = vmatpush1.msra.mxu0 0.0
  %1191 = vmatprep.subr.mxu0 0.0
  %1192 = vmatpush1.msra.mxu0 0.0
  %1193 = vmatprep.subr.mxu0 0.0
  %1194 = vmatpush1.msra.mxu0 0.0
  %1195 = vmatprep.subr.mxu0 0.0
  %1196 = vmatpush1.msra.mxu0 0.0
  %1197 = vmatprep.subr.mxu0 0.0
  %1198 = vmatpush1.msra.mxu0 0.0
  %1199 = vmatprep.subr.mxu0 0.0
  %1200 = vmatpush1.msra.mxu0 0.0
  %1201 = vmatprep.subr.mxu0 0.0
  %1202 = vmatpush1.msra.mxu0 0.0
  %1203 = vmatprep.subr.mxu0 0.0
  %1204 = vmatpush1.msra.mxu0 0.0
  %1205 = vmatprep.subr.mxu0 0.0
  %1206 = vmatpush1.msra.mxu0 0.0
  %1207 = vmatprep.subr.mxu0 0.0
  %1208 = vmatpush1.msra.mxu0 0.0
  %1209 = vmatprep.subr.mxu0 0.0
  %1210 = vmatpush1.msra.mxu0 0.0
  %1211 = vmatprep.subr.mxu0 0.0
  %1212 = vmatpush1.msra.mxu0 0.0
  %1213 = vmatprep.subr.mxu0 0.0
  %1214 = vmatpush1.msra.mxu0 0.0
  %1215 = vmatprep.subr.mxu0 0.0
  %1216 = vmatpush1.msra.mxu0 0.0
  %1217 = vmatprep.subr.mxu0 0.0
  %1218 = vmatpush1.msra.mxu0 0.0
  %1219 = vmatprep.subr.mxu0 0.0
  %1220 = vmatpush1.msra.mxu0 0.0
  %1221 = vmatprep.subr.mxu0 0.0
  %1222 = vmatpush1.msra.mxu0 0.0
  %1223 = vmatprep.subr.mxu0 0.0
  %1224 = vmatpush1.msra.mxu0 0.0
  %1225 = vmatprep.mubr.f32.mxu0 0.0
  %1226 = vmatmul.mubr.f32.gmra.mrb[0].mxu0 %v1159
  %v1227 = vpop.f32.mrb[0].mxu0
  %v1228 = vadd.f32 0.0, %v1227
  %v1229 = vpop.f32.mrb[0].mxu0
  %1230 = vdwg.mxu0
  %v1231 = vadd.f32 %v148, %v1228
  %v1232 = vtanh.pop %v1231
  %v1233 = vmul.f32 %v1232, 0.5
  %v1234 = vadd.f32 %v1233, 0.5
  %v1235 = vmul.f32 %v1234, %v1149
  %1237 = vrot.lane.b32.xlu0 %v1232, 56
  %v1238 = vpop.permute.xlu0 %1237
  %v1240 = vmul.f32 %v1234, %v1238
  %1242 = vrot.lane.b32.xlu0 %v1240, 24
  %v1243 = vpop.permute.xlu0 %1242
  %v1245 = vadd.f32 %v1235, %v1243
  %v1246 = vtanh.pop %v1245
  %1248 = vrot.lane.b32.xlu0 %v1246, 24
  %v1249 = vpop.permute.xlu0 %1248
  %v1251 = vmul.f32 %v1234, %v1249
  %v1252 = vld [vmem:[%s3] sm:$0xff]
  %v1253 = vld [vmem:[%s3 + $0x8] sm:$0xff]
  %v1254 = vld [vmem:[%s3 + $0x10] sm:$0xff]
  %v1255 = vld [vmem:[#allocation2] sm:$0x1]
  %v1257 = vlaneseq
  %v1258 = vshrl.u32 %v1257, 7
  %v1259 = vsub.s32 0, %v1258
  %v1260 = vrot.slane %v1255, %v1259
  %1263 = vrot.lane.b32.xlu0 %v1251, 80
  %v1264 = vpop.permute.xlu0 %1263
  %v1265 = vsel %vm171, %v1264, 0
  %1267 = vmatprep.subr.mxu0 0.0
  %1268 = vmatpush1.msra.mxu0 %v1252
  %1269 = vmatprep.subr.mxu0 0.0
  %1270 = vmatpush1.msra.mxu0 %v1253
  %1271 = vmatprep.subr.mxu0 0.0
  %1272 = vmatpush1.msra.mxu0 %v1254
  %1273 = vmatprep.subr.mxu0 0.0
  %1274 = vmatpush1.msra.mxu0 0.0
  %1275 = vmatprep.subr.mxu0 0.0
  %1276 = vmatpush1.msra.mxu0 0.0
  %1277 = vmatprep.subr.mxu0 0.0
  %1278 = vmatpush1.msra.mxu0 0.0
  %1279 = vmatprep.subr.mxu0 0.0
  %1280 = vmatpush1.msra.mxu0 0.0
  %1281 = vmatprep.subr.mxu0 0.0
  %1282 = vmatpush1.msra.mxu0 0.0
  %1283 = vmatprep.subr.mxu0 0.0
  %1284 = vmatpush1.msra.mxu0 0.0
  %1285 = vmatprep.subr.mxu0 0.0
  %1286 = vmatpush1.msra.mxu0 0.0
  %1287 = vmatprep.subr.mxu0 0.0
  %1288 = vmatpush1.msra.mxu0 0.0
  %1289 = vmatprep.subr.mxu0 0.0
  %1290 = vmatpush1.msra.mxu0 0.0
  %1291 = vmatprep.subr.mxu0 0.0
  %1292 = vmatpush1.msra.mxu0 0.0
  %1293 = vmatprep.subr.mxu0 0.0
  %1294 = vmatpush1.msra.mxu0 0.0
  %1295 = vmatprep.subr.mxu0 0.0
  %1296 = vmatpush1.msra.mxu0 0.0
  %1297 = vmatprep.subr.mxu0 0.0
  %1298 = vmatpush1.msra.mxu0 0.0
  %1299 = vmatprep.subr.mxu0 0.0
  %1300 = vmatpush1.msra.mxu0 0.0
  %1301 = vmatprep.subr.mxu0 0.0
  %1302 = vmatpush1.msra.mxu0 0.0
  %1303 = vmatprep.subr.mxu0 0.0
  %1304 = vmatpush1.msra.mxu0 0.0
  %1305 = vmatprep.subr.mxu0 0.0
  %1306 = vmatpush1.msra.mxu0 0.0
  %1307 = vmatprep.subr.mxu0 0.0
  %1308 = vmatpush1.msra.mxu0 0.0
  %1309 = vmatprep.subr.mxu0 0.0
  %1310 = vmatpush1.msra.mxu0 0.0
  %1311 = vmatprep.subr.mxu0 0.0
  %1312 = vmatpush1.msra.mxu0 0.0
  %1313 = vmatprep.subr.mxu0 0.0
  %1314 = vmatpush1.msra.mxu0 0.0
  %1315 = vmatprep.subr.mxu0 0.0
  %1316 = vmatpush1.msra.mxu0 0.0
  %1317 = vmatprep.subr.mxu0 0.0
  %1318 = vmatpush1.msra.mxu0 0.0
  %1319 = vmatprep.subr.mxu0 0.0
  %1320 = vmatpush1.msra.mxu0 0.0
  %1321 = vmatprep.subr.mxu0 0.0
  %1322 = vmatpush1.msra.mxu0 0.0
  %1323 = vmatprep.subr.mxu0 0.0
  %1324 = vmatpush1.msra.mxu0 0.0
  %1325 = vmatprep.subr.mxu0 0.0
  %1326 = vmatpush1.msra.mxu0 0.0
  %1327 = vmatprep.subr.mxu0 0.0
  %1328 = vmatpush1.msra.mxu0 0.0
  %1329 = vmatprep.subr.mxu0 0.0
  %1330 = vmatpush1.msra.mxu0 0.0
  %1331 = vmatprep.mubr.f32.mxu0 0.0
  %1332 = vmatmul.mubr.f32.gmra.mrb[0].mxu0 %v1265
  %v1333 = vpop.f32.mrb[0].mxu0
  %v1334 = vadd.f32 %v1260, %v1333
  %v1335 = vpop.f32.mrb[0].mxu0
  %1336 = vdwg.mxu0
  %vm1337 = vcmask 7168
  %1338 = vst.msk [vmem:[%s5] sm:$0xff] %vm1337, %v1334
  // Predicated region
  $region22: #{model5_forward.1} parent=0 // pred_check
    _
  $region23: #{model5_forward.1} parent=0 // pred_check_branch
    %1340 = sbr.rel (0) target = $region25
  $region24: #{model5_forward.1} parent=0 // pred_region
    _
  $region25: #{model5_forward.1} parent=0 // pred_fallthru
    _
  // Predicated region
  $region26: #{model5_forward.1} parent=0 // pred_check
    _
  $region27: #{model5_forward.1} parent=0 // pred_check_branch
    %1342 = sbr.rel (0) target = $region29
  $region28: #{model5_forward.1} parent=0 // pred_region
    _
  $region29: #{model5_forward.1} parent=0 // pred_fallthru
    _

</llo_original>
